<compile_context>
chip_gen: v5e
topology: v5e:2x2
jax: 0.10.0
libtpu: 0.0.40
codegen_flags: <defaults>
</compile_context>

<pallas_src>
import jax
import jax.numpy as jnp
import numpy as np
from jax.experimental import pallas as pl
from jax.experimental.pallas import tpu as pltpu

MXU_DTYPE = jnp.float32   # jnp.bfloat16 on v6e/v7x (keep f32 accumulation; loosen test tol)


# ----------------------------------------------------------------------------
# Kernel 1: conv1 (transposed im2col matmul) + bias + ReLU + 2x2 max-pool.
#   patches_ref : (1, 4, K, TN)  4 = positions in the 2x2 pool window, K = 9*Cin,
#                                TN = tile of pooled output pixels (lane axis)
#   w_ref       : (Cout, K)
#   b_ref       : (Cout, 1)      f32
#   out_ref     : (1, Cout, TN)  pooled activations, lane-dense
# ----------------------------------------------------------------------------
def conv_relu_pool_kernel(patches_ref, w_ref, b_ref, out_ref):
    w = w_ref[...]
    acc = jnp.dot(w, patches_ref[0, 0, :, :], preferred_element_type=jnp.float32)
    for p in range(1, 4):          # running max over the 2x2 pooling window
        acc = jnp.maximum(
            acc, jnp.dot(w, patches_ref[0, p, :, :], preferred_element_type=jnp.float32))
    # bias + ReLU hoisted out of the pooling loop (exact, relu(t+b) is monotone in t)
    out_ref[0, :, :] = jnp.maximum(acc + b_ref[...], 0.0)


def conv_relu_pool(patches, w_t, b_col, tile_n=512):
    B, P, K, N = patches.shape
    Cout = w_t.shape[0]
    tn = tile_n if (N % tile_n == 0) else N
    return pl.pallas_call(
        conv_relu_pool_kernel,
        out_shape=jax.ShapeDtypeStruct((B, Cout, N), jnp.float32),
        grid=(B, N // tn),
        in_specs=[
            pl.BlockSpec((1, P, K, tn), lambda b, n: (b, 0, 0, n)),
            pl.BlockSpec((Cout, K), lambda b, n: (0, 0)),
            pl.BlockSpec((Cout, 1), lambda b, n: (0, 0)),
        ],
        out_specs=pl.BlockSpec((1, Cout, tn), lambda b, n: (b, 0, n)),
        compiler_params=pltpu.CompilerParams(
            dimension_semantics=("parallel", "parallel")),
    )(patches, w_t, b_col)


# ----------------------------------------------------------------------------
# Kernel 2: conv2 + bias + ReLU + 2x2 max-pool + fc1 + ReLU + fc2, fused.
#   patches_ref : (1, 4, K2, N2)   K2 = 9*8 = 72, N2 = 16*16 = 256
#   w2_ref      : (C2, K2)         C2 = 16
#   b2_ref      : (C2, 1)          f32
#   fc1w_ref    : (C2, H, N2)      fc1 weight with the NCHW flatten folded in
#   fc1b_ref    : (1, H)           f32
#   fc2w_ref    : (H, O)
#   fc2b_ref    : (1, O)           f32
#   out_ref     : (1, 1, O)
# ----------------------------------------------------------------------------
def conv2_pool_mlp_kernel(patches_ref, w2_ref, b2_ref, fc1w_ref, fc1b_ref,
                          fc2w_ref, fc2b_ref, out_ref):
    w2 = w2_ref[...]
    acc = jnp.dot(w2, patches_ref[0, 0, :, :], preferred_element_type=jnp.float32)
    for p in range(1, 4):
        acc = jnp.maximum(
            acc, jnp.dot(w2, patches_ref[0, p, :, :], preferred_element_type=jnp.float32))
    feat = jnp.maximum(acc + b2_ref[...], 0.0)    # (C2, N2) == PyTorch flatten order (c, h, w)

    # fc1: h[j] = b1[j] + sum_c sum_n feat[c, n] * fc1w[c, j, n]   (lane-dense NT matmuls)
    feat_m = feat.astype(fc1w_ref.dtype)
    h = fc1b_ref[...]                             # (1, H), f32
    for c in range(w2.shape[0]):                  # static unroll over the 16 channels
        h = h + jax.lax.dot_general(
            feat_m[c:c + 1, :], fc1w_ref[c],
            (((1,), (1,)), ((), ())),
            preferred_element_type=jnp.float32)
    h = jnp.maximum(h, 0.0)

    # fc2
    y = jnp.dot(h.astype(fc2w_ref.dtype), fc2w_ref[...],
                preferred_element_type=jnp.float32) + fc2b_ref[...]
    out_ref[0, :, :] = y


def conv2_pool_mlp(patches, w2_t, b2_col, fc1w_p, fc1b_row, fc2w_t, fc2b_row):
    B, P, K, N = patches.shape
    C2 = w2_t.shape[0]
    H, O = fc2w_t.shape
    out = pl.pallas_call(
        conv2_pool_mlp_kernel,
        out_shape=jax.ShapeDtypeStruct((B, 1, O), jnp.float32),
        grid=(B,),
        in_specs=[
            pl.BlockSpec((1, P, K, N), lambda b: (b, 0, 0, 0)),
            pl.BlockSpec((C2, K), lambda b: (0, 0)),
            pl.BlockSpec((C2, 1), lambda b: (0, 0)),
            pl.BlockSpec((C2, H, N), lambda b: (0, 0, 0)),
            pl.BlockSpec((1, H), lambda b: (0, 0)),
            pl.BlockSpec((H, O), lambda b: (0, 0)),
            pl.BlockSpec((1, O), lambda b: (0, 0)),
        ],
        out_specs=pl.BlockSpec((1, 1, O), lambda b: (b, 0, 0)),
        compiler_params=pltpu.CompilerParams(dimension_semantics=("parallel",)),
    )(patches, w2_t, b2_col, fc1w_p, fc1b_row, fc2w_t, fc2b_row)
    return out.reshape(B, O)


# ----------------------------------------------------------------------------
# Glue: im2col (NCHW) that also groups the 4 pixels of each 2x2 pooling window,
# transposed so the pooled-pixel axis is LAST (lane-dense inside the kernel).
# Output: (B, 4, 9*Cin, (H//2)*(W//2)); K order = (kh*3 + kw)*Cin + ci,
# pool index = ph*2 + pw, pixel index = hh*(W//2) + wh.
# ----------------------------------------------------------------------------
def im2col_pool_t(x_nchw, ksize=3, pad=1):
    B, C, H, W = x_nchw.shape
    xp = jnp.pad(x_nchw, ((0, 0), (0, 0), (pad, pad), (pad, pad)))
    taps = [xp[:, :, kh:kh + H, kw:kw + W] for kh in range(ksize) for kw in range(ksize)]
    p = jnp.stack(taps, axis=1)                    # (B, 9, C, H, W)
    K = ksize * ksize * C
    p = p.reshape(B, K, H, W)                      # K index = (kh*3+kw)*C + ci
    Hh, Wh = H // 2, W // 2
    p = p.reshape(B, K, Hh, 2, Wh, 2)
    p = p.transpose(0, 3, 5, 1, 2, 4)              # (B, 2, 2, K, Hh, Wh)
    return p.reshape(B, 4, K, Hh * Wh)


def conv_weight_t(w):
    # PyTorch (Cout, Cin, kh, kw) -> (Cout, 9*Cin), matching the im2col K ordering.
    Cout, Cin, kh, kw = w.shape
    return jnp.transpose(w, (0, 2, 3, 1)).reshape(Cout, kh * kw * Cin)


def light_cnn_forward(x_nchw, params):
    B, _, H, W = x_nchw.shape
    C1 = params["conv1_w"].shape[0]
    C2 = params["conv2_w"].shape[0]
    Hdim = params["fc1_w"].shape[0]
    N2 = (H // 4) * (W // 4)

    # conv1 + relu + pool   (im2col in XLA, matmul/bias/relu/pool in Pallas)
    p1 = im2col_pool_t(x_nchw).astype(MXU_DTYPE)
    w1 = conv_weight_t(params["conv1_w"]).astype(MXU_DTYPE)
    a1 = conv_relu_pool(p1, w1, params["conv1_b"].reshape(-1, 1))     # (B, C1, (H/2)*(W/2))
    a1 = a1.reshape(B, C1, H // 2, W // 2)                            # free reshape, NCHW order

    # conv2 + relu + pool + fc1 + relu + fc2 in one fused kernel.
    p2 = im2col_pool_t(a1).astype(MXU_DTYPE)
    w2 = conv_weight_t(params["conv2_w"]).astype(MXU_DTYPE)
    # Fold the PyTorch NCHW flatten into fc1's weight: fc1_w[j, c*N2 + n] -> fc1w_p[c, j, n]
    fc1w_p = params["fc1_w"].reshape(Hdim, C2, N2).transpose(1, 0, 2).astype(MXU_DTYPE)
    fc2w_t = params["fc2_w"].T.astype(MXU_DTYPE)                      # (32, 2)
    return conv2_pool_mlp(
        p2, w2, params["conv2_b"].reshape(-1, 1),
        fc1w_p, params["fc1_b"].reshape(1, -1),
        fc2w_t, params["fc2_b"].reshape(1, -1))


# ----------------------------------------------------------------------------
# Pure-JAX f32 reference for correctness checking.
# ----------------------------------------------------------------------------
def reference_forward(x_nchw, params):
    x = jnp.transpose(x_nchw, (0, 2, 3, 1))

    def conv(x, w, b):
        y = jax.lax.conv_general_dilated(
            x, jnp.transpose(w, (2, 3, 1, 0)), window_strides=(1, 1), padding="SAME",
            dimension_numbers=("NHWC", "HWIO", "NHWC"))
        return y + b

    def pool(x):
        return jax.lax.reduce_window(x, -jnp.inf, jax.lax.max,
                                     (1, 2, 2, 1), (1, 2, 2, 1), "VALID")

    x = pool(jax.nn.relu(conv(x, params["conv1_w"], params["conv1_b"])))
    x = pool(jax.nn.relu(conv(x, params["conv2_w"], params["conv2_b"])))
    feat = jnp.transpose(x, (0, 3, 1, 2)).reshape(x.shape[0], -1)
    h = jax.nn.relu(feat @ params["fc1_w"].T + params["fc1_b"])
    return h @ params["fc2_w"].T + params["fc2_b"]


if __name__ == "__main__":
    key = jax.random.PRNGKey(0)
    ks = jax.random.split(key, 9)
    # Deterministic synthetic parameters (shapes from LightCNN.__init__; flatten_size = 16*16*16 = 4096)
    params = {
        "conv1_w": jax.random.normal(ks[0], (8, 3, 3, 3), jnp.float32) * 0.1,
        "conv1_b": jax.random.normal(ks[1], (8,), jnp.float32) * 0.1,
        "conv2_w": jax.random.normal(ks[2], (16, 8, 3, 3), jnp.float32) * 0.1,
        "conv2_b": jax.random.normal(ks[3], (16,), jnp.float32) * 0.1,
        "fc1_w": jax.random.normal(ks[4], (32, 4096), jnp.float32) * 0.02,
        "fc1_b": jax.random.normal(ks[5], (32,), jnp.float32) * 0.02,
        "fc2_w": jax.random.normal(ks[6], (2, 32), jnp.float32) * 0.1,
        "fc2_b": jax.random.normal(ks[7], (2,), jnp.float32) * 0.1,
    }
    # Input matches the module's expected spatial size (64x64) so flatten_size == 4096.
    x = jax.random.normal(ks[8], (2, 3, 64, 64), jnp.float32)

    out = jax.jit(light_cnn_forward)(x, params)
    jax.block_until_ready(out)
    assert out.shape == (2, 2)

    ref = jax.jit(reference_forward)(x, params)
    np.testing.assert_allclose(np.asarray(out), np.asarray(ref), rtol=1e-3, atol=1e-3)

    print("KERNEL_OK")
</pallas_src>

<mosaic_0001>
module attributes {stable_mosaic.version = 11 : i64} {
  func.func @conv_relu_pool_kernel(%arg0: i32, %arg1: i32, %arg2: memref<1x4x27x512xf32, #tpu.memory_space<vmem>>, %arg3: memref<8x27xf32, #tpu.memory_space<vmem>>, %arg4: memref<8x1xf32, #tpu.memory_space<vmem>>, %arg5: memref<1x8x512xf32, #tpu.memory_space<vmem>>) attributes {dimension_semantics = [#tpu.dimension_semantics<parallel>, #tpu.dimension_semantics<parallel>], iteration_bounds = array<i64: 2, 2>, scalar_prefetch = 0 : i64, scratch_operands = 0 : i64, tpu.core_type = #tpu.core_type<tc>, window_params = [{transform_indices = @transform_0, window_bounds = array<i64: 1, 4, 27, 512>}, {pipeline_mode = #tpu.pipeline_mode<synchronous>, transform_indices = @transform_1, window_bounds = array<i64: 8, 27>}, {pipeline_mode = #tpu.pipeline_mode<synchronous>, transform_indices = @transform_2, window_bounds = array<i64: 8, 1>}, {transform_indices = @transform_3, window_bounds = array<i64: 1, 8, 512>}]} {
    %c0 = arith.constant 0 : index
    %c0_0 = arith.constant 0 : index
    %0 = vector.load %arg3[%c0, %c0_0] : memref<8x27xf32, #tpu.memory_space<vmem>>, vector<8x27xf32>
    %c0_1 = arith.constant 0 : index
    %c0_2 = arith.constant 0 : index
    %c0_3 = arith.constant 0 : index
    %c0_4 = arith.constant 0 : index
    %1 = vector.load %arg2[%c0_1, %c0_2, %c0_3, %c0_4] : memref<1x4x27x512xf32, #tpu.memory_space<vmem>>, vector<1x1x27x512xf32>
    %2 = vector.shape_cast %1 : vector<1x1x27x512xf32> to vector<27x512xf32>
    %cst = arith.constant dense<0.000000e+00> : vector<8x512xf32>
    %3 = tpu.matmul %0, %2, %cst {dimension_numbers = #tpu.dot_dimension_numbers<[1], [0], [0], [1], [0, 0, 1, 1], [], []>} : vector<8x27xf32>, vector<27x512xf32>, vector<8x512xf32> -> vector<8x512xf32>
    %c0_5 = arith.constant 0 : index
    %c1 = arith.constant 1 : index
    %c0_6 = arith.constant 0 : index
    %c0_7 = arith.constant 0 : index
    %4 = vector.load %arg2[%c0_5, %c1, %c0_6, %c0_7] : memref<1x4x27x512xf32, #tpu.memory_space<vmem>>, vector<1x1x27x512xf32>
    %5 = vector.shape_cast %4 : vector<1x1x27x512xf32> to vector<27x512xf32>
    %cst_8 = arith.constant dense<0.000000e+00> : vector<8x512xf32>
    %6 = tpu.matmul %0, %5, %cst_8 {dimension_numbers = #tpu.dot_dimension_numbers<[1], [0], [0], [1], [0, 0, 1, 1], [], []>} : vector<8x27xf32>, vector<27x512xf32>, vector<8x512xf32> -> vector<8x512xf32>
    %7 = arith.maximumf %3, %6 : vector<8x512xf32>
    %c0_9 = arith.constant 0 : index
    %c2 = arith.constant 2 : index
    %c0_10 = arith.constant 0 : index
    %c0_11 = arith.constant 0 : index
    %8 = vector.load %arg2[%c0_9, %c2, %c0_10, %c0_11] : memref<1x4x27x512xf32, #tpu.memory_space<vmem>>, vector<1x1x27x512xf32>
    %9 = vector.shape_cast %8 : vector<1x1x27x512xf32> to vector<27x512xf32>
    %cst_12 = arith.constant dense<0.000000e+00> : vector<8x512xf32>
    %10 = tpu.matmul %0, %9, %cst_12 {dimension_numbers = #tpu.dot_dimension_numbers<[1], [0], [0], [1], [0, 0, 1, 1], [], []>} : vector<8x27xf32>, vector<27x512xf32>, vector<8x512xf32> -> vector<8x512xf32>
    %11 = arith.maximumf %7, %10 : vector<8x512xf32>
    %c0_13 = arith.constant 0 : index
    %c3 = arith.constant 3 : index
    %c0_14 = arith.constant 0 : index
    %c0_15 = arith.constant 0 : index
    %12 = vector.load %arg2[%c0_13, %c3, %c0_14, %c0_15] : memref<1x4x27x512xf32, #tpu.memory_space<vmem>>, vector<1x1x27x512xf32>
    %13 = vector.shape_cast %12 : vector<1x1x27x512xf32> to vector<27x512xf32>
    %cst_16 = arith.constant dense<0.000000e+00> : vector<8x512xf32>
    %14 = tpu.matmul %0, %13, %cst_16 {dimension_numbers = #tpu.dot_dimension_numbers<[1], [0], [0], [1], [0, 0, 1, 1], [], []>} : vector<8x27xf32>, vector<27x512xf32>, vector<8x512xf32> -> vector<8x512xf32>
    %15 = arith.maximumf %11, %14 : vector<8x512xf32>
    %c0_17 = arith.constant 0 : index
    %c0_18 = arith.constant 0 : index
    %16 = vector.load %arg4[%c0_17, %c0_18] : memref<8x1xf32, #tpu.memory_space<vmem>>, vector<8x1xf32>
    %17 = vector.broadcast %16 : vector<8x1xf32> to vector<8x512xf32>
    %18 = arith.addf %15, %17 : vector<8x512xf32>
    %cst_19 = arith.constant 0.000000e+00 : f32
    %19 = vector.broadcast %cst_19 : f32 to vector<8x512xf32>
    %20 = arith.maximumf %18, %19 : vector<8x512xf32>
    %c0_20 = arith.constant 0 : index
    %c0_21 = arith.constant 0 : index
    %c0_22 = arith.constant 0 : index
    %21 = vector.load %arg5[%c0_20, %c0_21, %c0_22] : memref<1x8x512xf32, #tpu.memory_space<vmem>>, vector<1x8x512xf32>
    %22 = vector.shape_cast %21 : vector<1x8x512xf32> to vector<8x512xf32>
    %23 = vector.shape_cast %20 : vector<8x512xf32> to vector<1x8x512xf32>
    tpu.vector_store %arg5[%c0_20, %c0_21, %c0_22], %23 {strides = array<i32>} : memref<1x8x512xf32, #tpu.memory_space<vmem>>, vector<1x8x512xf32>,
    return
  }
  func.func @transform_0(%arg0: i32, %arg1: i32) -> (i32, i32, i32, i32) {
    %c0_i32 = arith.constant 0 : i32
    %c0_i32_0 = arith.constant 0 : i32
    %c0_i32_1 = arith.constant 0 : i32
    return %arg0, %c0_i32, %c0_i32_0, %arg1 : i32, i32, i32, i32
  }
  func.func @transform_1(%arg0: i32, %arg1: i32) -> (i32, i32) {
    %c0_i32 = arith.constant 0 : i32
    %c0_i32_0 = arith.constant 0 : i32
    %c0_i32_1 = arith.constant 0 : i32
    return %c0_i32, %c0_i32_0 : i32, i32
  }
  func.func @transform_2(%arg0: i32, %arg1: i32) -> (i32, i32) {
    %c0_i32 = arith.constant 0 : i32
    %c0_i32_0 = arith.constant 0 : i32
    %c0_i32_1 = arith.constant 0 : i32
    return %c0_i32, %c0_i32_0 : i32, i32
  }
  func.func @transform_3(%arg0: i32, %arg1: i32) -> (i32, i32, i32) {
    %c0_i32 = arith.constant 0 : i32
    %c0_i32_0 = arith.constant 0 : i32
    return %arg0, %c0_i32, %arg1 : i32, i32, i32
  }
}

module attributes {stable_mosaic.version = 11 : i64} {
  func.func @conv2_pool_mlp_kernel(%arg0: i32, %arg1: memref<1x4x72x256xf32, #tpu.memory_space<vmem>>, %arg2: memref<16x72xf32, #tpu.memory_space<vmem>>, %arg3: memref<16x1xf32, #tpu.memory_space<vmem>>, %arg4: memref<16x32x256xf32, #tpu.memory_space<vmem>>, %arg5: memref<1x32xf32, #tpu.memory_space<vmem>>, %arg6: memref<32x2xf32, #tpu.memory_space<vmem>>, %arg7: memref<1x2xf32, #tpu.memory_space<vmem>>, %arg8: memref<1x1x2xf32, #tpu.memory_space<vmem>>) attributes {dimension_semantics = [#tpu.dimension_semantics<parallel>], iteration_bounds = array<i64: 2>, scalar_prefetch = 0 : i64, scratch_operands = 0 : i64, tpu.core_type = #tpu.core_type<tc>, window_params = [{transform_indices = @transform_0, window_bounds = array<i64: 1, 4, 72, 256>}, {pipeline_mode = #tpu.pipeline_mode<synchronous>, transform_indices = @transform_1, window_bounds = array<i64: 16, 72>}, {pipeline_mode = #tpu.pipeline_mode<synchronous>, transform_indices = @transform_2, window_bounds = array<i64: 16, 1>}, {pipeline_mode = #tpu.pipeline_mode<synchronous>, transform_indices = @transform_3, window_bounds = array<i64: 16, 32, 256>}, {pipeline_mode = #tpu.pipeline_mode<synchronous>, transform_indices = @transform_4, window_bounds = array<i64: 1, 32>}, {pipeline_mode = #tpu.pipeline_mode<synchronous>, transform_indices = @transform_5, window_bounds = array<i64: 32, 2>}, {pipeline_mode = #tpu.pipeline_mode<synchronous>, transform_indices = @transform_6, window_bounds = array<i64: 1, 2>}, {transform_indices = @transform_7, window_bounds = array<i64: 1, 1, 2>}]} {
    %c0 = arith.constant 0 : index
    %c0_0 = arith.constant 0 : index
    %0 = vector.load %arg2[%c0, %c0_0] : memref<16x72xf32, #tpu.memory_space<vmem>>, vector<16x72xf32>
    %c0_1 = arith.constant 0 : index
    %c0_2 = arith.constant 0 : index
    %c0_3 = arith.constant 0 : index
    %c0_4 = arith.constant 0 : index
    %1 = vector.load %arg1[%c0_1, %c0_2, %c0_3, %c0_4] : memref<1x4x72x256xf32, #tpu.memory_space<vmem>>, vector<1x1x72x256xf32>
    %2 = vector.shape_cast %1 : vector<1x1x72x256xf32> to vector<72x256xf32>
    %cst = arith.constant dense<0.000000e+00> : vector<16x256xf32>
    %3 = tpu.matmul %0, %2, %cst {dimension_numbers = #tpu.dot_dimension_numbers<[1], [0], [0], [1], [0, 0, 1, 1], [], []>} : vector<16x72xf32>, vector<72x256xf32>, vector<16x256xf32> -> vector<16x256xf32>
    %c0_5 = arith.constant 0 : index
    %c1 = arith.constant 1 : index
    %c0_6 = arith.constant 0 : index
    %c0_7 = arith.constant 0 : index
    %4 = vector.load %arg1[%c0_5, %c1, %c0_6, %c0_7] : memref<1x4x72x256xf32, #tpu.memory_space<vmem>>, vector<1x1x72x256xf32>
    %5 = vector.shape_cast %4 : vector<1x1x72x256xf32> to vector<72x256xf32>
    %cst_8 = arith.constant dense<0.000000e+00> : vector<16x256xf32>
    %6 = tpu.matmul %0, %5, %cst_8 {dimension_numbers = #tpu.dot_dimension_numbers<[1], [0], [0], [1], [0, 0, 1, 1], [], []>} : vector<16x72xf32>, vector<72x256xf32>, vector<16x256xf32> -> vector<16x256xf32>
    %7 = arith.maximumf %3, %6 : vector<16x256xf32>
    %c0_9 = arith.constant 0 : index
    %c2 = arith.constant 2 : index
    %c0_10 = arith.constant 0 : index
    %c0_11 = arith.constant 0 : index
    %8 = vector.load %arg1[%c0_9, %c2, %c0_10, %c0_11] : memref<1x4x72x256xf32, #tpu.memory_space<vmem>>, vector<1x1x72x256xf32>
    %9 = vector.shape_cast %8 : vector<1x1x72x256xf32> to vector<72x256xf32>
    %cst_12 = arith.constant dense<0.000000e+00> : vector<16x256xf32>
    %10 = tpu.matmul %0, %9, %cst_12 {dimension_numbers = #tpu.dot_dimension_numbers<[1], [0], [0], [1], [0, 0, 1, 1], [], []>} : vector<16x72xf32>, vector<72x256xf32>, vector<16x256xf32> -> vector<16x256xf32>
    %11 = arith.maximumf %7, %10 : vector<16x256xf32>
    %c0_13 = arith.constant 0 : index
    %c3 = arith.constant 3 : index
    %c0_14 = arith.constant 0 : index
    %c0_15 = arith.constant 0 : index
    %12 = vector.load %arg1[%c0_13, %c3, %c0_14, %c0_15] : memref<1x4x72x256xf32, #tpu.memory_space<vmem>>, vector<1x1x72x256xf32>
    %13 = vector.shape_cast %12 : vector<1x1x72x256xf32> to vector<72x256xf32>
    %cst_16 = arith.constant dense<0.000000e+00> : vector<16x256xf32>
    %14 = tpu.matmul %0, %13, %cst_16 {dimension_numbers = #tpu.dot_dimension_numbers<[1], [0], [0], [1], [0, 0, 1, 1], [], []>} : vector<16x72xf32>, vector<72x256xf32>, vector<16x256xf32> -> vector<16x256xf32>
    %15 = arith.maximumf %11, %14 : vector<16x256xf32>
    %c0_17 = arith.constant 0 : index
    %c0_18 = arith.constant 0 : index
    %16 = vector.load %arg3[%c0_17, %c0_18] : memref<16x1xf32, #tpu.memory_space<vmem>>, vector<16x1xf32>
    %17 = vector.broadcast %16 : vector<16x1xf32> to vector<16x256xf32>
    %18 = arith.addf %15, %17 : vector<16x256xf32>
    %cst_19 = arith.constant 0.000000e+00 : f32
    %19 = vector.broadcast %cst_19 : f32 to vector<16x256xf32>
    %20 = arith.maximumf %18, %19 : vector<16x256xf32>
    %c0_20 = arith.constant 0 : index
    %c0_21 = arith.constant 0 : index
    %21 = vector.load %arg5[%c0_20, %c0_21] : memref<1x32xf32, #tpu.memory_space<vmem>>, vector<1x32xf32>
    %22 = vector.extract_strided_slice %20 {offsets = [0, 0], sizes = [1, 256], strides = [1, 1]} : vector<16x256xf32> to vector<1x256xf32>
    %c0_22 = arith.constant 0 : index
    %c0_23 = arith.constant 0 : index
    %c0_24 = arith.constant 0 : index
    %23 = vector.load %arg4[%c0_22, %c0_23, %c0_24] : memref<16x32x256xf32, #tpu.memory_space<vmem>>, vector<1x32x256xf32>
    %24 = vector.shape_cast %23 : vector<1x32x256xf32> to vector<32x256xf32>
    %cst_25 = arith.constant dense<0.000000e+00> : vector<1x32xf32>
    %25 = tpu.matmul %22, %24, %cst_25 {dimension_numbers = #tpu.dot_dimension_numbers<[1], [1], [0], [0], [0, 0, 1, 0], [], []>} : vector<1x256xf32>, vector<32x256xf32>, vector<1x32xf32> -> vector<1x32xf32>
    %26 = arith.addf %21, %25 : vector<1x32xf32>
    %27 = vector.extract_strided_slice %20 {offsets = [1, 0], sizes = [1, 256], strides = [1, 1]} : vector<16x256xf32> to vector<1x256xf32>
    %c1_26 = arith.constant 1 : index
    %c0_27 = arith.constant 0 : index
    %c0_28 = arith.constant 0 : index
    %28 = vector.load %arg4[%c1_26, %c0_27, %c0_28] : memref<16x32x256xf32, #tpu.memory_space<vmem>>, vector<1x32x256xf32>
    %29 = vector.shape_cast %28 : vector<1x32x256xf32> to vector<32x256xf32>
    %cst_29 = arith.constant dense<0.000000e+00> : vector<1x32xf32>
    %30 = tpu.matmul %27, %29, %cst_29 {dimension_numbers = #tpu.dot_dimension_numbers<[1], [1], [0], [0], [0, 0, 1, 0], [], []>} : vector<1x256xf32>, vector<32x256xf32>, vector<1x32xf32> -> vector<1x32xf32>
    %31 = arith.addf %26, %30 : vector<1x32xf32>
    %32 = vector.extract_strided_slice %20 {offsets = [2, 0], sizes = [1, 256], strides = [1, 1]} : vector<16x256xf32> to vector<1x256xf32>
    %c2_30 = arith.constant 2 : index
    %c0_31 = arith.constant 0 : index
    %c0_32 = arith.constant 0 : index
    %33 = vector.load %arg4[%c2_30, %c0_31, %c0_32] : memref<16x32x256xf32, #tpu.memory_space<vmem>>, vector<1x32x256xf32>
    %34 = vector.shape_cast %33 : vector<1x32x256xf32> to vector<32x256xf32>
    %cst_33 = arith.constant dense<0.000000e+00> : vector<1x32xf32>
    %35 = tpu.matmul %32, %34, %cst_33 {dimension_numbers = #tpu.dot_dimension_numbers<[1], [1], [0], [0], [0, 0, 1, 0], [], []>} : vector<1x256xf32>, vector<32x256xf32>, vector<1x32xf32> -> vector<1x32xf32>
    %36 = arith.addf %31, %35 : vector<1x32xf32>
    %37 = vector.extract_strided_slice %20 {offsets = [3, 0], sizes = [1, 256], strides = [1, 1]} : vector<16x256xf32> to vector<1x256xf32>
    %c3_34 = arith.constant 3 : index
    %c0_35 = arith.constant 0 : index
    %c0_36 = arith.constant 0 : index
    %38 = vector.load %arg4[%c3_34, %c0_35, %c0_36] : memref<16x32x256xf32, #tpu.memory_space<vmem>>, vector<1x32x256xf32>
    %39 = vector.shape_cast %38 : vector<1x32x256xf32> to vector<32x256xf32>
    %cst_37 = arith.constant dense<0.000000e+00> : vector<1x32xf32>
    %40 = tpu.matmul %37, %39, %cst_37 {dimension_numbers = #tpu.dot_dimension_numbers<[1], [1], [0], [0], [0, 0, 1, 0], [], []>} : vector<1x256xf32>, vector<32x256xf32>, vector<1x32xf32> -> vector<1x32xf32>
    %41 = arith.addf %36, %40 : vector<1x32xf32>
    %42 = vector.extract_strided_slice %20 {offsets = [4, 0], sizes = [1, 256], strides = [1, 1]} : vector<16x256xf32> to vector<1x256xf32>
    %c4 = arith.constant 4 : index
    %c0_38 = arith.constant 0 : index
    %c0_39 = arith.constant 0 : index
    %43 = vector.load %arg4[%c4, %c0_38, %c0_39] : memref<16x32x256xf32, #tpu.memory_space<vmem>>, vector<1x32x256xf32>
    %44 = vector.shape_cast %43 : vector<1x32x256xf32> to vector<32x256xf32>
    %cst_40 = arith.constant dense<0.000000e+00> : vector<1x32xf32>
    %45 = tpu.matmul %42, %44, %cst_40 {dimension_numbers = #tpu.dot_dimension_numbers<[1], [1], [0], [0], [0, 0, 1, 0], [], []>} : vector<1x256xf32>, vector<32x256xf32>, vector<1x32xf32> -> vector<1x32xf32>
    %46 = arith.addf %41, %45 : vector<1x32xf32>
    %47 = vector.extract_strided_slice %20 {offsets = [5, 0], sizes = [1, 256], strides = [1, 1]} : vector<16x256xf32> to vector<1x256xf32>
    %c5 = arith.constant 5 : index
    %c0_41 = arith.constant 0 : index
    %c0_42 = arith.constant 0 : index
    %48 = vector.load %arg4[%c5, %c0_41, %c0_42] : memref<16x32x256xf32, #tpu.memory_space<vmem>>, vector<1x32x256xf32>
    %49 = vector.shape_cast %48 : vector<1x32x256xf32> to vector<32x256xf32>
    %cst_43 = arith.constant dense<0.000000e+00> : vector<1x32xf32>
    %50 = tpu.matmul %47, %49, %cst_43 {dimension_numbers = #tpu.dot_dimension_numbers<[1], [1], [0], [0], [0, 0, 1, 0], [], []>} : vector<1x256xf32>, vector<32x256xf32>, vector<1x32xf32> -> vector<1x32xf32>
    %51 = arith.addf %46, %50 : vector<1x32xf32>
    %52 = vector.extract_strided_slice %20 {offsets = [6, 0], sizes = [1, 256], strides = [1, 1]} : vector<16x256xf32> to vector<1x256xf32>
    %c6 = arith.constant 6 : index
    %c0_44 = arith.constant 0 : index
    %c0_45 = arith.constant 0 : index
    %53 = vector.load %arg4[%c6, %c0_44, %c0_45] : memref<16x32x256xf32, #tpu.memory_space<vmem>>, vector<1x32x256xf32>
    %54 = vector.shape_cast %53 : vector<1x32x256xf32> to vector<32x256xf32>
    %cst_46 = arith.constant dense<0.000000e+00> : vector<1x32xf32>
    %55 = tpu.matmul %52, %54, %cst_46 {dimension_numbers = #tpu.dot_dimension_numbers<[1], [1], [0], [0], [0, 0, 1, 0], [], []>} : vector<1x256xf32>, vector<32x256xf32>, vector<1x32xf32> -> vector<1x32xf32>
    %56 = arith.addf %51, %55 : vector<1x32xf32>
    %57 = vector.extract_strided_slice %20 {offsets = [7, 0], sizes = [1, 256], strides = [1, 1]} : vector<16x256xf32> to vector<1x256xf32>
    %c7 = arith.constant 7 : index
    %c0_47 = arith.constant 0 : index
    %c0_48 = arith.constant 0 : index
    %58 = vector.load %arg4[%c7, %c0_47, %c0_48] : memref<16x32x256xf32, #tpu.memory_space<vmem>>, vector<1x32x256xf32>
    %59 = vector.shape_cast %58 : vector<1x32x256xf32> to vector<32x256xf32>
    %cst_49 = arith.constant dense<0.000000e+00> : vector<1x32xf32>
    %60 = tpu.matmul %57, %59, %cst_49 {dimension_numbers = #tpu.dot_dimension_numbers<[1], [1], [0], [0], [0, 0, 1, 0], [], []>} : vector<1x256xf32>, vector<32x256xf32>, vector<1x32xf32> -> vector<1x32xf32>
    %61 = arith.addf %56, %60 : vector<1x32xf32>
    %62 = vector.extract_strided_slice %20 {offsets = [8, 0], sizes = [1, 256], strides = [1, 1]} : vector<16x256xf32> to vector<1x256xf32>
    %c8 = arith.constant 8 : index
    %c0_50 = arith.constant 0 : index
    %c0_51 = arith.constant 0 : index
    %63 = vector.load %arg4[%c8, %c0_50, %c0_51] : memref<16x32x256xf32, #tpu.memory_space<vmem>>, vector<1x32x256xf32>
    %64 = vector.shape_cast %63 : vector<1x32x256xf32> to vector<32x256xf32>
    %cst_52 = arith.constant dense<0.000000e+00> : vector<1x32xf32>
    %65 = tpu.matmul %62, %64, %cst_52 {dimension_numbers = #tpu.dot_dimension_numbers<[1], [1], [0], [0], [0, 0, 1, 0], [], []>} : vector<1x256xf32>, vector<32x256xf32>, vector<1x32xf32> -> vector<1x32xf32>
    %66 = arith.addf %61, %65 : vector<1x32xf32>
    %67 = vector.extract_strided_slice %20 {offsets = [9, 0], sizes = [1, 256], strides = [1, 1]} : vector<16x256xf32> to vector<1x256xf32>
    %c9 = arith.constant 9 : index
    %c0_53 = arith.constant 0 : index
    %c0_54 = arith.constant 0 : index
    %68 = vector.load %arg4[%c9, %c0_53, %c0_54] : memref<16x32x256xf32, #tpu.memory_space<vmem>>, vector<1x32x256xf32>
    %69 = vector.shape_cast %68 : vector<1x32x256xf32> to vector<32x256xf32>
    %cst_55 = arith.constant dense<0.000000e+00> : vector<1x32xf32>
    %70 = tpu.matmul %67, %69, %cst_55 {dimension_numbers = #tpu.dot_dimension_numbers<[1], [1], [0], [0], [0, 0, 1, 0], [], []>} : vector<1x256xf32>, vector<32x256xf32>, vector<1x32xf32> -> vector<1x32xf32>
    %71 = arith.addf %66, %70 : vector<1x32xf32>
    %72 = vector.extract_strided_slice %20 {offsets = [10, 0], sizes = [1, 256], strides = [1, 1]} : vector<16x256xf32> to vector<1x256xf32>
    %c10 = arith.constant 10 : index
    %c0_56 = arith.constant 0 : index
    %c0_57 = arith.constant 0 : index
    %73 = vector.load %arg4[%c10, %c0_56, %c0_57] : memref<16x32x256xf32, #tpu.memory_space<vmem>>, vector<1x32x256xf32>
    %74 = vector.shape_cast %73 : vector<1x32x256xf32> to vector<32x256xf32>
    %cst_58 = arith.constant dense<0.000000e+00> : vector<1x32xf32>
    %75 = tpu.matmul %72, %74, %cst_58 {dimension_numbers = #tpu.dot_dimension_numbers<[1], [1], [0], [0], [0, 0, 1, 0], [], []>} : vector<1x256xf32>, vector<32x256xf32>, vector<1x32xf32> -> vector<1x32xf32>
    %76 = arith.addf %71, %75 : vector<1x32xf32>
    %77 = vector.extract_strided_slice %20 {offsets = [11, 0], sizes = [1, 256], strides = [1, 1]} : vector<16x256xf32> to vector<1x256xf32>
    %c11 = arith.constant 11 : index
    %c0_59 = arith.constant 0 : index
    %c0_60 = arith.constant 0 : index
    %78 = vector.load %arg4[%c11, %c0_59, %c0_60] : memref<16x32x256xf32, #tpu.memory_space<vmem>>, vector<1x32x256xf32>
    %79 = vector.shape_cast %78 : vector<1x32x256xf32> to vector<32x256xf32>
    %cst_61 = arith.constant dense<0.000000e+00> : vector<1x32xf32>
    %80 = tpu.matmul %77, %79, %cst_61 {dimension_numbers = #tpu.dot_dimension_numbers<[1], [1], [0], [0], [0, 0, 1, 0], [], []>} : vector<1x256xf32>, vector<32x256xf32>, vector<1x32xf32> -> vector<1x32xf32>
    %81 = arith.addf %76, %80 : vector<1x32xf32>
    %82 = vector.extract_strided_slice %20 {offsets = [12, 0], sizes = [1, 256], strides = [1, 1]} : vector<16x256xf32> to vector<1x256xf32>
    %c12 = arith.constant 12 : index
    %c0_62 = arith.constant 0 : index
    %c0_63 = arith.constant 0 : index
    %83 = vector.load %arg4[%c12, %c0_62, %c0_63] : memref<16x32x256xf32, #tpu.memory_space<vmem>>, vector<1x32x256xf32>
    %84 = vector.shape_cast %83 : vector<1x32x256xf32> to vector<32x256xf32>
    %cst_64 = arith.constant dense<0.000000e+00> : vector<1x32xf32>
    %85 = tpu.matmul %82, %84, %cst_64 {dimension_numbers = #tpu.dot_dimension_numbers<[1], [1], [0], [0], [0, 0, 1, 0], [], []>} : vector<1x256xf32>, vector<32x256xf32>, vector<1x32xf32> -> vector<1x32xf32>
    %86 = arith.addf %81, %85 : vector<1x32xf32>
    %87 = vector.extract_strided_slice %20 {offsets = [13, 0], sizes = [1, 256], strides = [1, 1]} : vector<16x256xf32> to vector<1x256xf32>
    %c13 = arith.constant 13 : index
    %c0_65 = arith.constant 0 : index
    %c0_66 = arith.constant 0 : index
    %88 = vector.load %arg4[%c13, %c0_65, %c0_66] : memref<16x32x256xf32, #tpu.memory_space<vmem>>, vector<1x32x256xf32>
    %89 = vector.shape_cast %88 : vector<1x32x256xf32> to vector<32x256xf32>
    %cst_67 = arith.constant dense<0.000000e+00> : vector<1x32xf32>
    %90 = tpu.matmul %87, %89, %cst_67 {dimension_numbers = #tpu.dot_dimension_numbers<[1], [1], [0], [0], [0, 0, 1, 0], [], []>} : vector<1x256xf32>, vector<32x256xf32>, vector<1x32xf32> -> vector<1x32xf32>
    %91 = arith.addf %86, %90 : vector<1x32xf32>
    %92 = vector.extract_strided_slice %20 {offsets = [14, 0], sizes = [1, 256], strides = [1, 1]} : vector<16x256xf32> to vector<1x256xf32>
    %c14 = arith.constant 14 : index
    %c0_68 = arith.constant 0 : index
    %c0_69 = arith.constant 0 : index
    %93 = vector.load %arg4[%c14, %c0_68, %c0_69] : memref<16x32x256xf32, #tpu.memory_space<vmem>>, vector<1x32x256xf32>
    %94 = vector.shape_cast %93 : vector<1x32x256xf32> to vector<32x256xf32>
    %cst_70 = arith.constant dense<0.000000e+00> : vector<1x32xf32>
    %95 = tpu.matmul %92, %94, %cst_70 {dimension_numbers = #tpu.dot_dimension_numbers<[1], [1], [0], [0], [0, 0, 1, 0], [], []>} : vector<1x256xf32>, vector<32x256xf32>, vector<1x32xf32> -> vector<1x32xf32>
    %96 = arith.addf %91, %95 : vector<1x32xf32>
    %97 = vector.extract_strided_slice %20 {offsets = [15, 0], sizes = [1, 256], strides = [1, 1]} : vector<16x256xf32> to vector<1x256xf32>
    %c15 = arith.constant 15 : index
    %c0_71 = arith.constant 0 : index
    %c0_72 = arith.constant 0 : index
    %98 = vector.load %arg4[%c15, %c0_71, %c0_72] : memref<16x32x256xf32, #tpu.memory_space<vmem>>, vector<1x32x256xf32>
    %99 = vector.shape_cast %98 : vector<1x32x256xf32> to vector<32x256xf32>
    %cst_73 = arith.constant dense<0.000000e+00> : vector<1x32xf32>
    %100 = tpu.matmul %97, %99, %cst_73 {dimension_numbers = #tpu.dot_dimension_numbers<[1], [1], [0], [0], [0, 0, 1, 0], [], []>} : vector<1x256xf32>, vector<32x256xf32>, vector<1x32xf32> -> vector<1x32xf32>
    %101 = arith.addf %96, %100 : vector<1x32xf32>
    %cst_74 = arith.constant 0.000000e+00 : f32
    %102 = vector.broadcast %cst_74 : f32 to vector<1x32xf32>
    %103 = arith.maximumf %101, %102 : vector<1x32xf32>
    %c0_75 = arith.constant 0 : index
    %c0_76 = arith.constant 0 : index
    %104 = vector.load %arg6[%c0_75, %c0_76] : memref<32x2xf32, #tpu.memory_space<vmem>>, vector<32x2xf32>
    %cst_77 = arith.constant dense<0.000000e+00> : vector<1x2xf32>
    %105 = tpu.matmul %103, %104, %cst_77 {dimension_numbers = #tpu.dot_dimension_numbers<[1], [0], [0], [1], [0, 0, 1, 1], [], []>} : vector<1x32xf32>, vector<32x2xf32>, vector<1x2xf32> -> vector<1x2xf32>
    %c0_78 = arith.constant 0 : index
    %c0_79 = arith.constant 0 : index
    %106 = vector.load %arg7[%c0_78, %c0_79] : memref<1x2xf32, #tpu.memory_space<vmem>>, vector<1x2xf32>
    %107 = arith.addf %105, %106 : vector<1x2xf32>
    %c0_80 = arith.constant 0 : index
    %c0_81 = arith.constant 0 : index
    %c0_82 = arith.constant 0 : index
    %108 = vector.load %arg8[%c0_80, %c0_81, %c0_82] : memref<1x1x2xf32, #tpu.memory_space<vmem>>, vector<1x1x2xf32>
    %109 = vector.shape_cast %108 : vector<1x1x2xf32> to vector<1x2xf32>
    %110 = vector.shape_cast %107 : vector<1x2xf32> to vector<1x1x2xf32>
    tpu.vector_store %arg8[%c0_80, %c0_81, %c0_82], %110 {strides = array<i32>} : memref<1x1x2xf32, #tpu.memory_space<vmem>>, vector<1x1x2xf32>,
    return
  }
  func.func @transform_0(%arg0: i32) -> (i32, i32, i32, i32) {
    %c0_i32 = arith.constant 0 : i32
    %c0_i32_0 = arith.constant 0 : i32
    %c0_i32_1 = arith.constant 0 : i32
    %c0_i32_2 = arith.constant 0 : i32
    return %arg0, %c0_i32, %c0_i32_0, %c0_i32_1 : i32, i32, i32, i32
  }
  func.func @transform_1(%arg0: i32) -> (i32, i32) {
    %c0_i32 = arith.constant 0 : i32
    %c0_i32_0 = arith.constant 0 : i32
    %c0_i32_1 = arith.constant 0 : i32
    return %c0_i32, %c0_i32_0 : i32, i32
  }
  func.func @transform_2(%arg0: i32) -> (i32, i32) {
    %c0_i32 = arith.constant 0 : i32
    %c0_i32_0 = arith.constant 0 : i32
    %c0_i32_1 = arith.constant 0 : i32
    return %c0_i32, %c0_i32_0 : i32, i32
  }
  func.func @transform_3(%arg0: i32) -> (i32, i32, i32) {
    %c0_i32 = arith.constant 0 : i32
    %c0_i32_0 = arith.constant 0 : i32
    %c0_i32_1 = arith.constant 0 : i32
    %c0_i32_2 = arith.constant 0 : i32
    return %c0_i32, %c0_i32_0, %c0_i32_1 : i32, i32, i32
  }
  func.func @transform_4(%arg0: i32) -> (i32, i32) {
    %c0_i32 = arith.constant 0 : i32
    %c0_i32_0 = arith.constant 0 : i32
    %c0_i32_1 = arith.constant 0 : i32
    return %c0_i32, %c0_i32_0 : i32, i32
  }
  func.func @transform_5(%arg0: i32) -> (i32, i32) {
    %c0_i32 = arith.constant 0 : i32
    %c0_i32_0 = arith.constant 0 : i32
    %c0_i32_1 = arith.constant 0 : i32
    return %c0_i32, %c0_i32_0 : i32, i32
  }
  func.func @transform_6(%arg0: i32) -> (i32, i32) {
    %c0_i32 = arith.constant 0 : i32
    %c0_i32_0 = arith.constant 0 : i32
    %c0_i32_1 = arith.constant 0 : i32
    return %c0_i32, %c0_i32_0 : i32, i32
  }
  func.func @transform_7(%arg0: i32) -> (i32, i32, i32) {
    %c0_i32 = arith.constant 0 : i32
    %c0_i32_0 = arith.constant 0 : i32
    %c0_i32_1 = arith.constant 0 : i32
    return %arg0, %c0_i32, %c0_i32_0 : i32, i32, i32
  }
}

</mosaic_0001>

<llo_original>
// kernel: light_cnn_forward.2
$region0: #{light_cnn_forward.2}
  #allocation0 [shape = 'u32[]', space=smem, size = 0x4, offset = 0x4, fixed_abs, tag = 'smem constant byte address 0x4 - core index']
  #allocation1 [shape = 'u32[72,128]{1,0:T(1,128)}', space=vmem, size = 0x9000, scoped, tag = 'internal scratch']
  %s0 = inlined_call_operand.vmem [shape: f32[2,4,27,1024], index: 0, kind: input, shape index: {}]
  %s1 = inlined_call_operand.vmem [shape: f32[8,27], index: 1, kind: input, shape index: {}]
  %s2 = inlined_call_operand.vmem [shape: f32[8,1], index: 2, kind: input, shape index: {}]
  %s3 = inlined_call_operand.vmem [shape: f32[2,8,1024], index: 3, kind: output, shape index: {}]
  %s4 = sld [smem:[#allocation0]]
  $region68: #{light_cnn_forward.2} parent=0
    _
  %s6 = ssub.s32 1, %s4
  %s7 = scalar_select 0, %s6, %s4
  $region1: #{light_cnn_forward.2} parent=0
    #allocation2 [shape = 'u8[524288]{0}', space=vmem, size = 0x80000, scoped, tag = 'input window, operand 0']
    loop: start=0, step=1, limit=6
    $region2: #{light_cnn_forward.2} parent=1 // loop_pre_header
      _
    $region3: #{light_cnn_forward.2} parent=1 // loop_header
      %s9 = sphi 0, %s13
      %p10 = scmp.ge.s32.totalorder %s9, 6
      %s16 = sphi 0, %s28
      %s17 = sphi 0, %s24
      %s18 = sphi 0, %s16
      %s19 = sphi 0, %s17
      %s20 = sphi 0, %s18
      %s21 = sphi 0, %s19
      %s33 = sphi 0, %s35
      %s36 = sphi 0, %s33
      %s37 = sphi 0, %s36
      %s53 = sphi 0, %s37
      %s57 = sphi 0, %s57
      %s59 = sphi 0, %s57
      %s60 = sphi 0, %s59
      %s74 = sphi 0, %s60
      %s78 = sphi 0, %s78
      %s80 = sphi 0, %s78
      %s81 = sphi 0, %s80
      %s95 = sphi 0, %s81
      %s103 = sphi 0, %s105
      %s106 = sphi 0, %s103
      %s107 = sphi 0, %s106
      %s123 = sphi 0, %s107
    $region4: #{light_cnn_forward.2} parent=1 // loop_header_branch
      %12 = sbr.rel (%p10) target = $region8
    $region5: #{light_cnn_forward.2} parent=1 // loop_body
      %s14 = ssub.s32 %s9, 1
      %s15 = ssub.s32 %s9, 2
      %s22 = sadd.s32 1, %s17
      %p23 = scmp.ge.s32.totalorder %s22, 2
      %s24 = scalar_select %p23, 0, %s22
      %s25 = sadd.s32 1, %s16
      %s26 = scalar_select %p23, %s25, %s16
      %p27 = scmp.ge.s32.totalorder %s26, 2
      %s28 = scalar_select %p27, 0, %s26
      %s29 = ssub.s32 %s16, %s28
      %s30 = ssub.s32 %s17, %s24
      %s31 = sor.u32 %s29, %s30
      %p32 = scmp.eq.s32.totalorder %s31, 0
      %s34 = sadd.s32 %s33, 1
      %s35 = scalar_select %p32, %s33, %s34
      %p38 = pneg %p32
      %p39 = scmp.eq.s32.totalorder %s9, 3
      %p40 = por %p38, %p39
      %p41 = scmp.ne.s32.totalorder %s33, %s36
      %p42 = scmp.eq.s32.totalorder %s9, 0
      %p43 = por %p41, %p42
      %p44 = scmp.ne.s32.totalorder %s33, %s36
      %p45 = scmp.eq.s32.totalorder %s14, 3
      %p46 = por %p44, %p45
      %p47 = scmp.ne.s32.totalorder %s36, %s37
      %p48 = scmp.eq.s32.totalorder %s14, 0
      %p49 = por %p47, %p48
      %p50 = scmp.ne.s32.totalorder %s36, %s37
      %p51 = scmp.eq.s32.totalorder %s15, 3
      %p52 = por %p50, %p51
      %p54 = scmp.ne.s32.totalorder %s37, %s53
      %p55 = scmp.eq.s32.totalorder %s15, 0
      %p56 = por %p54, %p55
      %s58 = sadd.s32 %s57, 1
      %p61 = scmp.eq.s32.totalorder %s9, 3
      %p62 = scmp.ne.s32.totalorder %s57, %s59
      %p63 = scmp.eq.s32.totalorder %s9, 0
      %p64 = por %p62, %p63
      %p65 = scmp.ne.s32.totalorder %s57, %s59
      %p66 = scmp.eq.s32.totalorder %s14, 3
      %p67 = por %p65, %p66
      %p68 = scmp.ne.s32.totalorder %s59, %s60
      %p69 = scmp.eq.s32.totalorder %s14, 0
      %p70 = por %p68, %p69
      %p71 = scmp.ne.s32.totalorder %s59, %s60
      %p72 = scmp.eq.s32.totalorder %s15, 3
      %p73 = por %p71, %p72
      %p75 = scmp.ne.s32.totalorder %s60, %s74
      %p76 = scmp.eq.s32.totalorder %s15, 0
      %p77 = por %p75, %p76
      %s79 = sadd.s32 %s78, 1
      %p82 = scmp.eq.s32.totalorder %s9, 3
      %p83 = scmp.ne.s32.totalorder %s78, %s80
      %p84 = scmp.eq.s32.totalorder %s9, 0
      %p85 = por %p83, %p84
      %p86 = scmp.ne.s32.totalorder %s78, %s80
      %p87 = scmp.eq.s32.totalorder %s14, 3
      %p88 = por %p86, %p87
      %p89 = scmp.ne.s32.totalorder %s80, %s81
      %p90 = scmp.eq.s32.totalorder %s14, 0
      %p91 = por %p89, %p90
      %p92 = scmp.ne.s32.totalorder %s80, %s81
      %p93 = scmp.eq.s32.totalorder %s15, 3
      %p94 = por %p92, %p93
      %p96 = scmp.ne.s32.totalorder %s81, %s95
      %p97 = scmp.eq.s32.totalorder %s15, 0
      %p98 = por %p96, %p97
      %s99 = ssub.s32 %s16, %s28
      %s100 = ssub.s32 %s17, %s24
      %s101 = sor.u32 %s99, %s100
      %p102 = scmp.eq.s32.totalorder %s101, 0
      %s104 = sadd.s32 %s103, 1
      %s105 = scalar_select %p102, %s103, %s104
      %p108 = pneg %p102
      %p109 = scmp.eq.s32.totalorder %s9, 3
      %p110 = por %p108, %p109
      %p111 = scmp.ne.s32.totalorder %s103, %s106
      %p112 = scmp.eq.s32.totalorder %s9, 0
      %p113 = por %p111, %p112
      %p114 = scmp.ne.s32.totalorder %s103, %s106
      %p115 = scmp.eq.s32.totalorder %s14, 3
      %p116 = por %p114, %p115
      %p117 = scmp.ne.s32.totalorder %s106, %s107
      %p118 = scmp.eq.s32.totalorder %s14, 0
      %p119 = por %p117, %p118
      %p120 = scmp.ne.s32.totalorder %s106, %s107
      %p121 = scmp.eq.s32.totalorder %s15, 3
      %p122 = por %p120, %p121
      %p124 = scmp.ne.s32.totalorder %s107, %s123
      %p125 = scmp.eq.s32.totalorder %s15, 0
      %p126 = por %p124, %p125
      %p127 = scmp.le.s32.totalorder 1, %s9
      %p128 = scmp.lt.s32.totalorder %s9, 5
      %p129 = pnand %p127, %p128
      %p130 = pneg %p129
      // Predicated region
      $region9: #{light_cnn_forward.2} parent=5 // pred_check
        _
      $region10: #{light_cnn_forward.2} parent=5 // pred_check_branch
        %132 = sbr.rel (%p129) target = $region12
      $region11: #{light_cnn_forward.2} parent=5 // pred_region
        %s133 = ssub.s32 %s9, 1
        // Predicated region
        $region13: #{light_cnn_forward.2} parent=11 // pred_check
          %p134 = pneg %p70
        $region14: #{light_cnn_forward.2} parent=11 // pred_check_branch
          %136 = sbr.rel (%p134) target = $region16
        $region15: #{light_cnn_forward.2} parent=11 // pred_region
          _
        $region16: #{light_cnn_forward.2} parent=11 // pred_fallthru
          _
        // Predicated region
        $region17: #{light_cnn_forward.2} parent=11 // pred_check
          %p137 = pneg %p91
        $region18: #{light_cnn_forward.2} parent=11 // pred_check_branch
          %139 = sbr.rel (%p137) target = $region20
        $region19: #{light_cnn_forward.2} parent=11 // pred_region
          _
        $region20: #{light_cnn_forward.2} parent=11 // pred_fallthru
          _
      $region12: #{light_cnn_forward.2} parent=5 // pred_fallthru
        _
      %p140 = scmp.lt.s32.totalorder %s9, 4
      // Predicated region
      $region21: #{light_cnn_forward.2} parent=5 // pred_check
        %p141 = pneg %p140
      $region22: #{light_cnn_forward.2} parent=5 // pred_check_branch
        %143 = sbr.rel (%p141) target = $region24
      $region23: #{light_cnn_forward.2} parent=5 // pred_region
        // Predicated region
        $region25: #{light_cnn_forward.2} parent=23 // pred_check
          %p144 = pneg %p43
        $region26: #{light_cnn_forward.2} parent=23 // pred_check_branch
          %146 = sbr.rel (%p144) target = $region28
        $region27: #{light_cnn_forward.2} parent=23 // pred_region
          %s147 = sand.u32 %s33, 1
          %s148 = sand.u32 %s33, 1
          %s149 = smul.addr %s148, 512
          %s150 = scalar_lea.vmem [#allocation2], %s149
          %s151 = smul.u32 4, %s17
          %s152 = smul.addr %s16, 128
          %s153 = sadd.s32 %s151, %s152
          %s154 = smul.addr %s153, 8
          %s155 = scalar_lea.vmem %s0, %s154
          // Predicated region
          $region29: #{light_cnn_forward.2} parent=27 // pred_check
            _
          $region30: #{light_cnn_forward.2} parent=27 // pred_check_branch
            %157 = sbr.rel (0) target = $region32
          $region31: #{light_cnn_forward.2} parent=27 // pred_region
            // Predicated region
            $region33: #{light_cnn_forward.2} parent=31 // pred_check
              _
            $region34: #{light_cnn_forward.2} parent=31 // pred_check_branch
              %159 = sbr.rel (0) target = $region36
            $region35: #{light_cnn_forward.2} parent=31 // pred_region
              loop: start=0, step=1, limit=1
              $region37: #{light_cnn_forward.2} parent=35 // loop_pre_header
                _
              $region38: #{light_cnn_forward.2} parent=35 // loop_header
                %s161 = sphi 0, %s165
                %p162 = scmp.ge.s32.totalorder %s161, 1
                %s166 = sphi %s155, %s155
                %s167 = sphi %s150, %s150
              $region39: #{light_cnn_forward.2} parent=35 // loop_header_branch
                %164 = sbr.rel (%p162) target = $region43
              $region40: #{light_cnn_forward.2} parent=35 // loop_body
                %v168 = vld [vmem:[%s166] sm:$0xff]
                %169 = vst [vmem:[%s167] sm:$0xff] %v168
                %v170 = vld [vmem:[%s166 + $0x8] sm:$0xff]
                %171 = vst [vmem:[%s167 + $0x8] sm:$0xff] %v170
                %v172 = vld [vmem:[%s166 + $0x10] sm:$0xff]
                %173 = vst [vmem:[%s167 + $0x10] sm:$0xff] %v172
                %v174 = vld [vmem:[%s166 + $0x18] sm:$0xff]
                %175 = vst [vmem:[%s167 + $0x18] sm:$0xff] %v174
                %v176 = vld [vmem:[%s166 + $0x40] sm:$0xff]
                %177 = vst [vmem:[%s167 + $0x20] sm:$0xff] %v176
                %v178 = vld [vmem:[%s166 + $0x48] sm:$0xff]
                %179 = vst [vmem:[%s167 + $0x28] sm:$0xff] %v178
                %v180 = vld [vmem:[%s166 + $0x50] sm:$0xff]
                %181 = vst [vmem:[%s167 + $0x30] sm:$0xff] %v180
                %v182 = vld [vmem:[%s166 + $0x58] sm:$0xff]
                %183 = vst [vmem:[%s167 + $0x38] sm:$0xff] %v182
                %v184 = vld [vmem:[%s166 + $0x80] sm:$0xff]
                %185 = vst [vmem:[%s167 + $0x40] sm:$0xff] %v184
                %v186 = vld [vmem:[%s166 + $0x88] sm:$0xff]
                %187 = vst [vmem:[%s167 + $0x48] sm:$0xff] %v186
                %v188 = vld [vmem:[%s166 + $0x90] sm:$0xff]
                %189 = vst [vmem:[%s167 + $0x50] sm:$0xff] %v188
                %v190 = vld [vmem:[%s166 + $0x98] sm:$0xff]
                %191 = vst [vmem:[%s167 + $0x58] sm:$0xff] %v190
                %v192 = vld [vmem:[%s166 + $0xc0] sm:$0xff]
                %193 = vst [vmem:[%s167 + $0x60] sm:$0xff] %v192
                %v194 = vld [vmem:[%s166 + $0xc8] sm:$0xff]
                %195 = vst [vmem:[%s167 + $0x68] sm:$0xff] %v194
                %v196 = vld [vmem:[%s166 + $0xd0] sm:$0xff]
                %197 = vst [vmem:[%s167 + $0x70] sm:$0xff] %v196
                %v198 = vld [vmem:[%s166 + $0xd8] sm:$0xff]
                %199 = vst [vmem:[%s167 + $0x78] sm:$0xff] %v198
                %v200 = vld [vmem:[%s166 + $0x100] sm:$0xff]
                %201 = vst [vmem:[%s167 + $0x80] sm:$0xff] %v200
                %v202 = vld [vmem:[%s166 + $0x108] sm:$0xff]
                %203 = vst [vmem:[%s167 + $0x88] sm:$0xff] %v202
                %v204 = vld [vmem:[%s166 + $0x110] sm:$0xff]
                %205 = vst [vmem:[%s167 + $0x90] sm:$0xff] %v204
                %v206 = vld [vmem:[%s166 + $0x118] sm:$0xff]
                %207 = vst [vmem:[%s167 + $0x98] sm:$0xff] %v206
                %v208 = vld [vmem:[%s166 + $0x140] sm:$0xff]
                %209 = vst [vmem:[%s167 + $0xa0] sm:$0xff] %v208
                %v210 = vld [vmem:[%s166 + $0x148] sm:$0xff]
                %211 = vst [vmem:[%s167 + $0xa8] sm:$0xff] %v210
                %v212 = vld [vmem:[%s166 + $0x150] sm:$0xff]
                %213 = vst [vmem:[%s167 + $0xb0] sm:$0xff] %v212
                %v214 = vld [vmem:[%s166 + $0x158] sm:$0xff]
                %215 = vst [vmem:[%s167 + $0xb8] sm:$0xff] %v214
                %v216 = vld [vmem:[%s166 + $0x180] sm:$0xff]
                %217 = vst [vmem:[%s167 + $0xc0] sm:$0xff] %v216
                %v218 = vld [vmem:[%s166 + $0x188] sm:$0xff]
                %219 = vst [vmem:[%s167 + $0xc8] sm:$0xff] %v218
                %v220 = vld [vmem:[%s166 + $0x190] sm:$0xff]
                %221 = vst [vmem:[%s167 + $0xd0] sm:$0xff] %v220
                %v222 = vld [vmem:[%s166 + $0x198] sm:$0xff]
                %223 = vst [vmem:[%s167 + $0xd8] sm:$0xff] %v222
                %v224 = vld [vmem:[%s166 + $0x1c0] sm:$0xff]
                %225 = vst [vmem:[%s167 + $0xe0] sm:$0xff] %v224
                %v226 = vld [vmem:[%s166 + $0x1c8] sm:$0xff]
                %227 = vst [vmem:[%s167 + $0xe8] sm:$0xff] %v226
                %v228 = vld [vmem:[%s166 + $0x1d0] sm:$0xff]
                %229 = vst [vmem:[%s167 + $0xf0] sm:$0xff] %v228
                %v230 = vld [vmem:[%s166 + $0x1d8] sm:$0xff]
                %231 = vst [vmem:[%s167 + $0xf8] sm:$0xff] %v230
                %v232 = vld [vmem:[%s166 + $0x200] sm:$0xff]
                %233 = vst [vmem:[%s167 + $0x100] sm:$0xff] %v232
                %v234 = vld [vmem:[%s166 + $0x208] sm:$0xff]
                %235 = vst [vmem:[%s167 + $0x108] sm:$0xff] %v234
                %v236 = vld [vmem:[%s166 + $0x210] sm:$0xff]
                %237 = vst [vmem:[%s167 + $0x110] sm:$0xff] %v236
                %v238 = vld [vmem:[%s166 + $0x218] sm:$0xff]
                %239 = vst [vmem:[%s167 + $0x118] sm:$0xff] %v238
                %v240 = vld [vmem:[%s166 + $0x240] sm:$0xff]
                %241 = vst [vmem:[%s167 + $0x120] sm:$0xff] %v240
                %v242 = vld [vmem:[%s166 + $0x248] sm:$0xff]
                %243 = vst [vmem:[%s167 + $0x128] sm:$0xff] %v242
                %v244 = vld [vmem:[%s166 + $0x250] sm:$0xff]
                %245 = vst [vmem:[%s167 + $0x130] sm:$0xff] %v244
                %v246 = vld [vmem:[%s166 + $0x258] sm:$0xff]
                %247 = vst [vmem:[%s167 + $0x138] sm:$0xff] %v246
                %v248 = vld [vmem:[%s166 + $0x280] sm:$0xff]
                %249 = vst [vmem:[%s167 + $0x140] sm:$0xff] %v248
                %v250 = vld [vmem:[%s166 + $0x288] sm:$0xff]
                %251 = vst [vmem:[%s167 + $0x148] sm:$0xff] %v250
                %v252 = vld [vmem:[%s166 + $0x290] sm:$0xff]
                %253 = vst [vmem:[%s167 + $0x150] sm:$0xff] %v252
                %v254 = vld [vmem:[%s166 + $0x298] sm:$0xff]
                %255 = vst [vmem:[%s167 + $0x158] sm:$0xff] %v254
                %v256 = vld [vmem:[%s166 + $0x2c0] sm:$0xff]
                %257 = vst [vmem:[%s167 + $0x160] sm:$0xff] %v256
                %v258 = vld [vmem:[%s166 + $0x2c8] sm:$0xff]
                %259 = vst [vmem:[%s167 + $0x168] sm:$0xff] %v258
                %v260 = vld [vmem:[%s166 + $0x2d0] sm:$0xff]
                %261 = vst [vmem:[%s167 + $0x170] sm:$0xff] %v260
                %v262 = vld [vmem:[%s166 + $0x2d8] sm:$0xff]
                %263 = vst [vmem:[%s167 + $0x178] sm:$0xff] %v262
                %v264 = vld [vmem:[%s166 + $0x300] sm:$0xff]
                %265 = vst [vmem:[%s167 + $0x180] sm:$0xff] %v264
                %v266 = vld [vmem:[%s166 + $0x308] sm:$0xff]
                %267 = vst [vmem:[%s167 + $0x188] sm:$0xff] %v266
                %v268 = vld [vmem:[%s166 + $0x310] sm:$0xff]
                %269 = vst [vmem:[%s167 + $0x190] sm:$0xff] %v268
                %v270 = vld [vmem:[%s166 + $0x318] sm:$0xff]
                %271 = vst [vmem:[%s167 + $0x198] sm:$0xff] %v270
                %v272 = vld [vmem:[%s166 + $0x340] sm:$0xff]
                %273 = vst [vmem:[%s167 + $0x1a0] sm:$0xff] %v272
                %v274 = vld [vmem:[%s166 + $0x348] sm:$0xff]
                %275 = vst [vmem:[%s167 + $0x1a8] sm:$0xff] %v274
                %v276 = vld [vmem:[%s166 + $0x350] sm:$0xff]
                %277 = vst [vmem:[%s167 + $0x1b0] sm:$0xff] %v276
                %v278 = vld [vmem:[%s166 + $0x358] sm:$0xff]
                %279 = vst [vmem:[%s167 + $0x1b8] sm:$0xff] %v278
                %v280 = vld [vmem:[%s166 + $0x380] sm:$0xff]
                %281 = vst [vmem:[%s167 + $0x1c0] sm:$0xff] %v280
                %v282 = vld [vmem:[%s166 + $0x388] sm:$0xff]
                %283 = vst [vmem:[%s167 + $0x1c8] sm:$0xff] %v282
                %v284 = vld [vmem:[%s166 + $0x390] sm:$0xff]
                %285 = vst [vmem:[%s167 + $0x1d0] sm:$0xff] %v284
                %v286 = vld [vmem:[%s166 + $0x398] sm:$0xff]
                %287 = vst [vmem:[%s167 + $0x1d8] sm:$0xff] %v286
                %v288 = vld [vmem:[%s166 + $0x3c0] sm:$0xff]
                %289 = vst [vmem:[%s167 + $0x1e0] sm:$0xff] %v288
                %v290 = vld [vmem:[%s166 + $0x3c8] sm:$0xff]
                %291 = vst [vmem:[%s167 + $0x1e8] sm:$0xff] %v290
                %v292 = vld [vmem:[%s166 + $0x3d0] sm:$0xff]
                %293 = vst [vmem:[%s167 + $0x1f0] sm:$0xff] %v292
                %v294 = vld [vmem:[%s166 + $0x3d8] sm:$0xff]
                %295 = vst [vmem:[%s167 + $0x1f8] sm:$0xff] %v294
              $region41: #{light_cnn_forward.2} parent=35 // loop_footer
                %s165 = sadd.s32 1, %s161
              $region42: #{light_cnn_forward.2} parent=35 // loop_footer_branch
                %160 = sbr.rel target = $region38
              $region43: #{light_cnn_forward.2} parent=35 // loop_exit
                _
            $region36: #{light_cnn_forward.2} parent=31 // pred_fallthru
              _
            // Predicated region
            $region44: #{light_cnn_forward.2} parent=31 // pred_check
              _
            $region45: #{light_cnn_forward.2} parent=31 // pred_check_branch
              %297 = sbr.rel target = $region47
            $region46: #{light_cnn_forward.2} parent=31 // pred_region
              _
            $region47: #{light_cnn_forward.2} parent=31 // pred_fallthru
              _
          $region32: #{light_cnn_forward.2} parent=27 // pred_fallthru
            _
          %298 = vnop
        $region28: #{light_cnn_forward.2} parent=23 // pred_fallthru
          _
      $region24: #{light_cnn_forward.2} parent=5 // pred_fallthru
        _
      %p299 = scmp.le.s32.totalorder 1, %s9
      %p300 = scmp.lt.s32.totalorder %s9, 5
      %p301 = pnand %p299, %p300
      %p302 = pneg %p301
      // Predicated region
      $region48: #{light_cnn_forward.2} parent=5 // pred_check
        _
      $region49: #{light_cnn_forward.2} parent=5 // pred_check_branch
        %304 = sbr.rel (%p301) target = $region51
      $region50: #{light_cnn_forward.2} parent=5 // pred_region
        %s305 = ssub.s32 %s9, 1
        %s306 = sand.u32 %s36, 1
        %s307 = sand.u32 %s36, 1
        %s308 = smul.addr %s307, 512
        %s309 = scalar_lea.vmem [#allocation2], %s308
        // Predicated region
        $region52: #{light_cnn_forward.2} parent=50 // pred_check
          %p310 = pneg %p49
        $region53: #{light_cnn_forward.2} parent=50 // pred_check_branch
          %312 = sbr.rel (%p310) target = $region55
        $region54: #{light_cnn_forward.2} parent=50 // pred_region
          _
        $region55: #{light_cnn_forward.2} parent=50 // pred_fallthru
          _
        %s313 = sand.u32 %s36, 1
        %s314 = sand.u32 %s36, 1
        %s315 = smul.addr %s314, 512
        %s316 = scalar_lea.vmem [#allocation2], %s315
        %p317 = pneg %p49
        %p318 = pneg %p46
        %p319 = pneg %p70
        %p320 = pneg %p67
        %p321 = pneg %p91
        %p322 = pneg %p88
        %p323 = pneg %p119
        %p324 = pneg %p116
        %s325 = smul.u32 4, %s19
        %p326 = scmp.lt.s32.totalorder %s18, 1
        %s327 = scalar_select %p326, %s18, 1
        %p328 = scmp.lt.s32.totalorder %s325, 7
        %s329 = scalar_select %p328, %s325, 7
        %s330 = smul.addr %s327, 8
        %s331 = sadd.s32 %s329, %s330
        %s332 = smul.addr %s331, 8
        %s333 = scalar_lea.vmem %s3, %s332
        %s334 = smul.u32 4, %s19
        %s335 = smul.u32 4, %s19
        %p336 = scmp.lt.s32.totalorder %s18, 1
        %s337 = scalar_select %p336, %s18, 1
        %p338 = scmp.lt.s32.totalorder %s335, 7
        %s339 = scalar_select %p338, %s335, 7
        %s340 = smul.addr %s337, 8
        %s341 = sadd.s32 %s339, %s340
        %s342 = smul.addr %s341, 8
        %s343 = scalar_lea.vmem %s3, %s342
        %s344 = smul.u32 4, %s19
        %v345 = vld [vmem:[%s1] sm:$0xff]
        %v346 = vld [vmem:[%s309] sm:$0xff]
        %v347 = vld [vmem:[%s309 + $0x8] sm:$0xff]
        %v348 = vld [vmem:[%s309 + $0x10] sm:$0xff]
        %v349 = vld [vmem:[%s309 + $0x18] sm:$0xff]
        %v350 = vld [vmem:[%s309 + $0x20] sm:$0xff]
        %v351 = vld [vmem:[%s309 + $0x28] sm:$0xff]
        %v352 = vld [vmem:[%s309 + $0x30] sm:$0xff]
        %v353 = vld [vmem:[%s309 + $0x38] sm:$0xff]
        %v354 = vld [vmem:[%s309 + $0x40] sm:$0xff]
        %v355 = vld [vmem:[%s309 + $0x48] sm:$0xff]
        %v356 = vld [vmem:[%s309 + $0x50] sm:$0xff]
        %v357 = vld [vmem:[%s309 + $0x58] sm:$0xff]
        %v358 = vld [vmem:[%s309 + $0x60] sm:$0x7]
        %v359 = vld [vmem:[%s309 + $0x68] sm:$0x7]
        %v360 = vld [vmem:[%s309 + $0x70] sm:$0x7]
        %v361 = vld [vmem:[%s309 + $0x78] sm:$0x7]
        %vm362 = vcmask 220160
        %v364 = vsel %vm362, %v345, 0
        %vm366 = vcmask 1042432
        %v368 = vsel %vm366, %v358, 0
        %v371 = vsel %vm366, %v359, 0
        %v374 = vsel %vm366, %v360, 0
        %v377 = vsel %vm366, %v361, 0
        %379 = vmatpush.msra.mxu0 0.0
        %380 = vmatpush.msra.mxu0 0.0
        %381 = vmatpush.msra.mxu0 0.0
        %382 = vmatpush.msra.mxu0 0.0
        %383 = vmatpush.msra.mxu0 0.0
        %384 = vmatpush.msra.mxu0 0.0
        %385 = vmatpush.msra.mxu0 0.0
        %386 = vmatpush.msra.mxu0 0.0
        %387 = vmatpush.msra.mxu0 0.0
        %388 = vmatpush.msra.mxu0 0.0
        %389 = vmatpush.msra.mxu0 0.0
        %390 = vmatpush.msra.mxu0 0.0
        %391 = vmatpush.msra.mxu0 %v368
        %392 = vmatpush.msra.mxu0 %v354
        %393 = vmatpush.msra.mxu0 %v350
        %394 = vmatpush.msra.mxu0 %v346
        %395 = vmatmul.f32.gmra.mxu0 %v364
        %v396 = vpop.f32.mrf.mxu0
        %v397 = vadd.f32 0.0, %v396
        %398 = vdwg.mxu0
        %399 = vmatpush.msra.mxu0 0.0
        %400 = vmatpush.msra.mxu0 0.0
        %401 = vmatpush.msra.mxu0 0.0
        %402 = vmatpush.msra.mxu0 0.0
        %403 = vmatpush.msra.mxu0 0.0
        %404 = vmatpush.msra.mxu0 0.0
        %405 = vmatpush.msra.mxu0 0.0
        %406 = vmatpush.msra.mxu0 0.0
        %407 = vmatpush.msra.mxu0 0.0
        %408 = vmatpush.msra.mxu0 0.0
        %409 = vmatpush.msra.mxu0 0.0
        %410 = vmatpush.msra.mxu0 0.0
        %411 = vmatpush.msra.mxu0 %v371
        %412 = vmatpush.msra.mxu0 %v355
        %413 = vmatpush.msra.mxu0 %v351
        %414 = vmatpush.msra.mxu0 %v347
        %415 = vmatmul.f32.gmra.mxu0 %v364
        %v416 = vpop.f32.mrf.mxu0
        %v417 = vadd.f32 0.0, %v416
        %418 = vdwg.mxu0
        %419 = vmatpush.msra.mxu0 0.0
        %420 = vmatpush.msra.mxu0 0.0
        %421 = vmatpush.msra.mxu0 0.0
        %422 = vmatpush.msra.mxu0 0.0
        %423 = vmatpush.msra.mxu0 0.0
        %424 = vmatpush.msra.mxu0 0.0
        %425 = vmatpush.msra.mxu0 0.0
        %426 = vmatpush.msra.mxu0 0.0
        %427 = vmatpush.msra.mxu0 0.0
        %428 = vmatpush.msra.mxu0 0.0
        %429 = vmatpush.msra.mxu0 0.0
        %430 = vmatpush.msra.mxu0 0.0
        %431 = vmatpush.msra.mxu0 %v374
        %432 = vmatpush.msra.mxu0 %v356
        %433 = vmatpush.msra.mxu0 %v352
        %434 = vmatpush.msra.mxu0 %v348
        %435 = vmatmul.f32.gmra.mxu0 %v364
        %v436 = vpop.f32.mrf.mxu0
        %v437 = vadd.f32 0.0, %v436
        %438 = vdwg.mxu0
        %439 = vmatpush.msra.mxu0 0.0
        %440 = vmatpush.msra.mxu0 0.0
        %441 = vmatpush.msra.mxu0 0.0
        %442 = vmatpush.msra.mxu0 0.0
        %443 = vmatpush.msra.mxu0 0.0
        %444 = vmatpush.msra.mxu0 0.0
        %445 = vmatpush.msra.mxu0 0.0
        %446 = vmatpush.msra.mxu0 0.0
        %447 = vmatpush.msra.mxu0 0.0
        %448 = vmatpush.msra.mxu0 0.0
        %449 = vmatpush.msra.mxu0 0.0
        %450 = vmatpush.msra.mxu0 0.0
        %451 = vmatpush.msra.mxu0 %v377
        %452 = vmatpush.msra.mxu0 %v357
        %453 = vmatpush.msra.mxu0 %v353
        %454 = vmatpush.msra.mxu0 %v349
        %455 = vmatmul.f32.gmra.mxu0 %v364
        %v456 = vpop.f32.mrf.mxu0
        %v457 = vadd.f32 0.0, %v456
        %458 = vdwg.mxu0
        %s459 = scalar_lea.vmem %s309, 128 [#allocation2]
        %v460 = vld [vmem:[%s459] sm:$0xff]
        %v461 = vld [vmem:[%s459 + $0x8] sm:$0xff]
        %v462 = vld [vmem:[%s459 + $0x10] sm:$0xff]
        %v463 = vld [vmem:[%s459 + $0x18] sm:$0xff]
        %v464 = vld [vmem:[%s459 + $0x20] sm:$0xff]
        %v465 = vld [vmem:[%s459 + $0x28] sm:$0xff]
        %v466 = vld [vmem:[%s459 + $0x30] sm:$0xff]
        %v467 = vld [vmem:[%s459 + $0x38] sm:$0xff]
        %v468 = vld [vmem:[%s459 + $0x40] sm:$0xff]
        %v469 = vld [vmem:[%s459 + $0x48] sm:$0xff]
        %v470 = vld [vmem:[%s459 + $0x50] sm:$0xff]
        %v471 = vld [vmem:[%s459 + $0x58] sm:$0xff]
        %v472 = vld [vmem:[%s459 + $0x60] sm:$0x7]
        %v473 = vld [vmem:[%s459 + $0x68] sm:$0x7]
        %v474 = vld [vmem:[%s459 + $0x70] sm:$0x7]
        %v475 = vld [vmem:[%s459 + $0x78] sm:$0x7]
        %v477 = vsel %vm366, %v472, 0
        %v480 = vsel %vm366, %v473, 0
        %v483 = vsel %vm366, %v474, 0
        %v486 = vsel %vm366, %v475, 0
        %488 = vmatpush.msra.mxu0 0.0
        %489 = vmatpush.msra.mxu0 0.0
        %490 = vmatpush.msra.mxu0 0.0
        %491 = vmatpush.msra.mxu0 0.0
        %492 = vmatpush.msra.mxu0 0.0
        %493 = vmatpush.msra.mxu0 0.0
        %494 = vmatpush.msra.mxu0 0.0
        %495 = vmatpush.msra.mxu0 0.0
        %496 = vmatpush.msra.mxu0 0.0
        %497 = vmatpush.msra.mxu0 0.0
        %498 = vmatpush.msra.mxu0 0.0
        %499 = vmatpush.msra.mxu0 0.0
        %500 = vmatpush.msra.mxu0 %v477
        %501 = vmatpush.msra.mxu0 %v468
        %502 = vmatpush.msra.mxu0 %v464
        %503 = vmatpush.msra.mxu0 %v460
        %504 = vmatmul.f32.gmra.mxu0 %v364
        %v505 = vpop.f32.mrf.mxu0
        %v506 = vadd.f32 0.0, %v505
        %507 = vdwg.mxu0
        %508 = vmatpush.msra.mxu0 0.0
        %509 = vmatpush.msra.mxu0 0.0
        %510 = vmatpush.msra.mxu0 0.0
        %511 = vmatpush.msra.mxu0 0.0
        %512 = vmatpush.msra.mxu0 0.0
        %513 = vmatpush.msra.mxu0 0.0
        %514 = vmatpush.msra.mxu0 0.0
        %515 = vmatpush.msra.mxu0 0.0
        %516 = vmatpush.msra.mxu0 0.0
        %517 = vmatpush.msra.mxu0 0.0
        %518 = vmatpush.msra.mxu0 0.0
        %519 = vmatpush.msra.mxu0 0.0
        %520 = vmatpush.msra.mxu0 %v480
        %521 = vmatpush.msra.mxu0 %v469
        %522 = vmatpush.msra.mxu0 %v465
        %523 = vmatpush.msra.mxu0 %v461
        %524 = vmatmul.f32.gmra.mxu0 %v364
        %v525 = vpop.f32.mrf.mxu0
        %v526 = vadd.f32 0.0, %v525
        %527 = vdwg.mxu0
        %528 = vmatpush.msra.mxu0 0.0
        %529 = vmatpush.msra.mxu0 0.0
        %530 = vmatpush.msra.mxu0 0.0
        %531 = vmatpush.msra.mxu0 0.0
        %532 = vmatpush.msra.mxu0 0.0
        %533 = vmatpush.msra.mxu0 0.0
        %534 = vmatpush.msra.mxu0 0.0
        %535 = vmatpush.msra.mxu0 0.0
        %536 = vmatpush.msra.mxu0 0.0
        %537 = vmatpush.msra.mxu0 0.0
        %538 = vmatpush.msra.mxu0 0.0
        %539 = vmatpush.msra.mxu0 0.0
        %540 = vmatpush.msra.mxu0 %v483
        %541 = vmatpush.msra.mxu0 %v470
        %542 = vmatpush.msra.mxu0 %v466
        %543 = vmatpush.msra.mxu0 %v462
        %544 = vmatmul.f32.gmra.mxu0 %v364
        %v545 = vpop.f32.mrf.mxu0
        %v546 = vadd.f32 0.0, %v545
        %547 = vdwg.mxu0
        %548 = vmatpush.msra.mxu0 0.0
        %549 = vmatpush.msra.mxu0 0.0
        %550 = vmatpush.msra.mxu0 0.0
        %551 = vmatpush.msra.mxu0 0.0
        %552 = vmatpush.msra.mxu0 0.0
        %553 = vmatpush.msra.mxu0 0.0
        %554 = vmatpush.msra.mxu0 0.0
        %555 = vmatpush.msra.mxu0 0.0
        %556 = vmatpush.msra.mxu0 0.0
        %557 = vmatpush.msra.mxu0 0.0
        %558 = vmatpush.msra.mxu0 0.0
        %559 = vmatpush.msra.mxu0 0.0
        %560 = vmatpush.msra.mxu0 %v486
        %561 = vmatpush.msra.mxu0 %v471
        %562 = vmatpush.msra.mxu0 %v467
        %563 = vmatpush.msra.mxu0 %v463
        %564 = vmatmul.f32.gmra.mxu0 %v364
        %v565 = vpop.f32.mrf.mxu0
        %v566 = vadd.f32 0.0, %v565
        %567 = vdwg.mxu0
        %v568 = vmax.f32 %v397, %v506
        %v569 = vmax.f32 %v417, %v526
        %v570 = vmax.f32 %v437, %v546
        %v571 = vmax.f32 %v457, %v566
        %s572 = scalar_lea.vmem %s309, 256 [#allocation2]
        %v573 = vld [vmem:[%s572] sm:$0xff]
        %v574 = vld [vmem:[%s572 + $0x8] sm:$0xff]
        %v575 = vld [vmem:[%s572 + $0x10] sm:$0xff]
        %v576 = vld [vmem:[%s572 + $0x18] sm:$0xff]
        %v577 = vld [vmem:[%s572 + $0x20] sm:$0xff]
        %v578 = vld [vmem:[%s572 + $0x28] sm:$0xff]
        %v579 = vld [vmem:[%s572 + $0x30] sm:$0xff]
        %v580 = vld [vmem:[%s572 + $0x38] sm:$0xff]
        %v581 = vld [vmem:[%s572 + $0x40] sm:$0xff]
        %v582 = vld [vmem:[%s572 + $0x48] sm:$0xff]
        %v583 = vld [vmem:[%s572 + $0x50] sm:$0xff]
        %v584 = vld [vmem:[%s572 + $0x58] sm:$0xff]
        %v585 = vld [vmem:[%s572 + $0x60] sm:$0x7]
        %v586 = vld [vmem:[%s572 + $0x68] sm:$0x7]
        %v587 = vld [vmem:[%s572 + $0x70] sm:$0x7]
        %v588 = vld [vmem:[%s572 + $0x78] sm:$0x7]
        %v590 = vsel %vm366, %v585, 0
        %v593 = vsel %vm366, %v586, 0
        %v596 = vsel %vm366, %v587, 0
        %v599 = vsel %vm366, %v588, 0
        %601 = vmatpush.msra.mxu0 0.0
        %602 = vmatpush.msra.mxu0 0.0
        %603 = vmatpush.msra.mxu0 0.0
        %604 = vmatpush.msra.mxu0 0.0
        %605 = vmatpush.msra.mxu0 0.0
        %606 = vmatpush.msra.mxu0 0.0
        %607 = vmatpush.msra.mxu0 0.0
        %608 = vmatpush.msra.mxu0 0.0
        %609 = vmatpush.msra.mxu0 0.0
        %610 = vmatpush.msra.mxu0 0.0
        %611 = vmatpush.msra.mxu0 0.0
        %612 = vmatpush.msra.mxu0 0.0
        %613 = vmatpush.msra.mxu0 %v590
        %614 = vmatpush.msra.mxu0 %v581
        %615 = vmatpush.msra.mxu0 %v577
        %616 = vmatpush.msra.mxu0 %v573
        %617 = vmatmul.f32.gmra.mxu0 %v364
        %v618 = vpop.f32.mrf.mxu0
        %v619 = vadd.f32 0.0, %v618
        %620 = vdwg.mxu0
        %621 = vmatpush.msra.mxu0 0.0
        %622 = vmatpush.msra.mxu0 0.0
        %623 = vmatpush.msra.mxu0 0.0
        %624 = vmatpush.msra.mxu0 0.0
        %625 = vmatpush.msra.mxu0 0.0
        %626 = vmatpush.msra.mxu0 0.0
        %627 = vmatpush.msra.mxu0 0.0
        %628 = vmatpush.msra.mxu0 0.0
        %629 = vmatpush.msra.mxu0 0.0
        %630 = vmatpush.msra.mxu0 0.0
        %631 = vmatpush.msra.mxu0 0.0
        %632 = vmatpush.msra.mxu0 0.0
        %633 = vmatpush.msra.mxu0 %v593
        %634 = vmatpush.msra.mxu0 %v582
        %635 = vmatpush.msra.mxu0 %v578
        %636 = vmatpush.msra.mxu0 %v574
        %637 = vmatmul.f32.gmra.mxu0 %v364
        %v638 = vpop.f32.mrf.mxu0
        %v639 = vadd.f32 0.0, %v638
        %640 = vdwg.mxu0
        %641 = vmatpush.msra.mxu0 0.0
        %642 = vmatpush.msra.mxu0 0.0
        %643 = vmatpush.msra.mxu0 0.0
        %644 = vmatpush.msra.mxu0 0.0
        %645 = vmatpush.msra.mxu0 0.0
        %646 = vmatpush.msra.mxu0 0.0
        %647 = vmatpush.msra.mxu0 0.0
        %648 = vmatpush.msra.mxu0 0.0
        %649 = vmatpush.msra.mxu0 0.0
        %650 = vmatpush.msra.mxu0 0.0
        %651 = vmatpush.msra.mxu0 0.0
        %652 = vmatpush.msra.mxu0 0.0
        %653 = vmatpush.msra.mxu0 %v596
        %654 = vmatpush.msra.mxu0 %v583
        %655 = vmatpush.msra.mxu0 %v579
        %656 = vmatpush.msra.mxu0 %v575
        %657 = vmatmul.f32.gmra.mxu0 %v364
        %v658 = vpop.f32.mrf.mxu0
        %v659 = vadd.f32 0.0, %v658
        %660 = vdwg.mxu0
        %661 = vmatpush.msra.mxu0 0.0
        %662 = vmatpush.msra.mxu0 0.0
        %663 = vmatpush.msra.mxu0 0.0
        %664 = vmatpush.msra.mxu0 0.0
        %665 = vmatpush.msra.mxu0 0.0
        %666 = vmatpush.msra.mxu0 0.0
        %667 = vmatpush.msra.mxu0 0.0
        %668 = vmatpush.msra.mxu0 0.0
        %669 = vmatpush.msra.mxu0 0.0
        %670 = vmatpush.msra.mxu0 0.0
        %671 = vmatpush.msra.mxu0 0.0
        %672 = vmatpush.msra.mxu0 0.0
        %673 = vmatpush.msra.mxu0 %v599
        %674 = vmatpush.msra.mxu0 %v584
        %675 = vmatpush.msra.mxu0 %v580
        %676 = vmatpush.msra.mxu0 %v576
        %677 = vmatmul.f32.gmra.mxu0 %v364
        %v678 = vpop.f32.mrf.mxu0
        %v679 = vadd.f32 0.0, %v678
        %680 = vdwg.mxu0
        %v681 = vmax.f32 %v568, %v619
        %v682 = vmax.f32 %v569, %v639
        %v683 = vmax.f32 %v570, %v659
        %v684 = vmax.f32 %v571, %v679
        %s685 = scalar_lea.vmem %s309, 384 [#allocation2]
        %v686 = vld [vmem:[%s685] sm:$0xff]
        %v687 = vld [vmem:[%s685 + $0x8] sm:$0xff]
        %v688 = vld [vmem:[%s685 + $0x10] sm:$0xff]
        %v689 = vld [vmem:[%s685 + $0x18] sm:$0xff]
        %v690 = vld [vmem:[%s685 + $0x20] sm:$0xff]
        %v691 = vld [vmem:[%s685 + $0x28] sm:$0xff]
        %v692 = vld [vmem:[%s685 + $0x30] sm:$0xff]
        %v693 = vld [vmem:[%s685 + $0x38] sm:$0xff]
        %v694 = vld [vmem:[%s685 + $0x40] sm:$0xff]
        %v695 = vld [vmem:[%s685 + $0x48] sm:$0xff]
        %v696 = vld [vmem:[%s685 + $0x50] sm:$0xff]
        %v697 = vld [vmem:[%s685 + $0x58] sm:$0xff]
        %v698 = vld [vmem:[%s685 + $0x60] sm:$0x7]
        %v699 = vld [vmem:[%s685 + $0x68] sm:$0x7]
        %v700 = vld [vmem:[%s685 + $0x70] sm:$0x7]
        %v701 = vld [vmem:[%s685 + $0x78] sm:$0x7]
        %v703 = vsel %vm366, %v698, 0
        %v706 = vsel %vm366, %v699, 0
        %v709 = vsel %vm366, %v700, 0
        %v712 = vsel %vm366, %v701, 0
        %714 = vmatpush.msra.mxu0 0.0
        %715 = vmatpush.msra.mxu0 0.0
        %716 = vmatpush.msra.mxu0 0.0
        %717 = vmatpush.msra.mxu0 0.0
        %718 = vmatpush.msra.mxu0 0.0
        %719 = vmatpush.msra.mxu0 0.0
        %720 = vmatpush.msra.mxu0 0.0
        %721 = vmatpush.msra.mxu0 0.0
        %722 = vmatpush.msra.mxu0 0.0
        %723 = vmatpush.msra.mxu0 0.0
        %724 = vmatpush.msra.mxu0 0.0
        %725 = vmatpush.msra.mxu0 0.0
        %726 = vmatpush.msra.mxu0 %v703
        %727 = vmatpush.msra.mxu0 %v694
        %728 = vmatpush.msra.mxu0 %v690
        %729 = vmatpush.msra.mxu0 %v686
        %730 = vmatmul.f32.gmra.mxu0 %v364
        %v731 = vpop.f32.mrf.mxu0
        %v732 = vadd.f32 0.0, %v731
        %733 = vdwg.mxu0
        %734 = vmatpush.msra.mxu0 0.0
        %735 = vmatpush.msra.mxu0 0.0
        %736 = vmatpush.msra.mxu0 0.0
        %737 = vmatpush.msra.mxu0 0.0
        %738 = vmatpush.msra.mxu0 0.0
        %739 = vmatpush.msra.mxu0 0.0
        %740 = vmatpush.msra.mxu0 0.0
        %741 = vmatpush.msra.mxu0 0.0
        %742 = vmatpush.msra.mxu0 0.0
        %743 = vmatpush.msra.mxu0 0.0
        %744 = vmatpush.msra.mxu0 0.0
        %745 = vmatpush.msra.mxu0 0.0
        %746 = vmatpush.msra.mxu0 %v706
        %747 = vmatpush.msra.mxu0 %v695
        %748 = vmatpush.msra.mxu0 %v691
        %749 = vmatpush.msra.mxu0 %v687
        %750 = vmatmul.f32.gmra.mxu0 %v364
        %v751 = vpop.f32.mrf.mxu0
        %v752 = vadd.f32 0.0, %v751
        %753 = vdwg.mxu0
        %754 = vmatpush.msra.mxu0 0.0
        %755 = vmatpush.msra.mxu0 0.0
        %756 = vmatpush.msra.mxu0 0.0
        %757 = vmatpush.msra.mxu0 0.0
        %758 = vmatpush.msra.mxu0 0.0
        %759 = vmatpush.msra.mxu0 0.0
        %760 = vmatpush.msra.mxu0 0.0
        %761 = vmatpush.msra.mxu0 0.0
        %762 = vmatpush.msra.mxu0 0.0
        %763 = vmatpush.msra.mxu0 0.0
        %764 = vmatpush.msra.mxu0 0.0
        %765 = vmatpush.msra.mxu0 0.0
        %766 = vmatpush.msra.mxu0 %v709
        %767 = vmatpush.msra.mxu0 %v696
        %768 = vmatpush.msra.mxu0 %v692
        %769 = vmatpush.msra.mxu0 %v688
        %770 = vmatmul.f32.gmra.mxu0 %v364
        %v771 = vpop.f32.mrf.mxu0
        %v772 = vadd.f32 0.0, %v771
        %773 = vdwg.mxu0
        %774 = vmatpush.msra.mxu0 0.0
        %775 = vmatpush.msra.mxu0 0.0
        %776 = vmatpush.msra.mxu0 0.0
        %777 = vmatpush.msra.mxu0 0.0
        %778 = vmatpush.msra.mxu0 0.0
        %779 = vmatpush.msra.mxu0 0.0
        %780 = vmatpush.msra.mxu0 0.0
        %781 = vmatpush.msra.mxu0 0.0
        %782 = vmatpush.msra.mxu0 0.0
        %783 = vmatpush.msra.mxu0 0.0
        %784 = vmatpush.msra.mxu0 0.0
        %785 = vmatpush.msra.mxu0 0.0
        %786 = vmatpush.msra.mxu0 %v712
        %787 = vmatpush.msra.mxu0 %v697
        %788 = vmatpush.msra.mxu0 %v693
        %789 = vmatpush.msra.mxu0 %v689
        %790 = vmatmul.f32.gmra.mxu0 %v364
        %v791 = vpop.f32.mrf.mxu0
        %v792 = vadd.f32 0.0, %v791
        %793 = vdwg.mxu0
        %v794 = vmax.f32 %v681, %v732
        %v795 = vmax.f32 %v682, %v752
        %v796 = vmax.f32 %v683, %v772
        %v797 = vmax.f32 %v684, %v792
        %v798 = vld [vmem:[%s2] sm:$0xff]
        %800 = vset.pattern.permute.xlu0 0
        %801 = vperm.xlu0 %800, %v798
        %v802 = vpop.permute.xlu0 %801
        %v804 = vadd.f32 %v794, %v802
        %v805 = vadd.f32 %v795, %v802
        %v806 = vadd.f32 %v796, %v802
        %v807 = vadd.f32 %v797, %v802
        %v808 = vmax.f32 %v804, 0.0
        %v809 = vmax.f32 %v805, 0.0
        %v810 = vmax.f32 %v806, 0.0
        %v811 = vmax.f32 %v807, 0.0
        %812 = vst [vmem:[%s343] sm:$0xff] %v808
        %813 = vst [vmem:[%s343 + $0x8] sm:$0xff] %v809
        %814 = vst [vmem:[%s343 + $0x10] sm:$0xff] %v810
        %815 = vst [vmem:[%s343 + $0x18] sm:$0xff] %v811
        %s816 = smul.u32 4, %s19
        %p817 = scmp.lt.s32.totalorder %s18, 1
        %s818 = scalar_select %p817, %s18, 1
        %p819 = scmp.lt.s32.totalorder %s816, 7
        %s820 = scalar_select %p819, %s816, 7
        %s821 = smul.addr %s818, 8
        %s822 = sadd.s32 %s820, %s821
        %s823 = smul.addr %s822, 8
        %s824 = scalar_lea.vmem %s3, %s823
        // Predicated region
        $region56: #{light_cnn_forward.2} parent=50 // pred_check
          %p825 = pneg %p116
        $region57: #{light_cnn_forward.2} parent=50 // pred_check_branch
          %827 = sbr.rel (%p825) target = $region59
        $region58: #{light_cnn_forward.2} parent=50 // pred_region
          %s828 = smul.u32 4, %s19
        $region59: #{light_cnn_forward.2} parent=50 // pred_fallthru
          _
      $region51: #{light_cnn_forward.2} parent=5 // pred_fallthru
        _
      %p829 = scmp.le.s32.totalorder 2, %s9
      // Predicated region
      $region60: #{light_cnn_forward.2} parent=5 // pred_check
        %p830 = pneg %p829
      $region61: #{light_cnn_forward.2} parent=5 // pred_check_branch
        %832 = sbr.rel (%p830) target = $region63
      $region62: #{light_cnn_forward.2} parent=5 // pred_region
        %s833 = ssub.s32 %s9, 2
        // Predicated region
        $region64: #{light_cnn_forward.2} parent=62 // pred_check
          %p834 = pneg %p122
        $region65: #{light_cnn_forward.2} parent=62 // pred_check_branch
          %836 = sbr.rel (%p834) target = $region67
        $region66: #{light_cnn_forward.2} parent=62 // pred_region
          %s837 = smul.u32 4, %s21
          %p838 = scmp.lt.s32.totalorder %s20, 1
          %s839 = scalar_select %p838, %s20, 1
          %p840 = scmp.lt.s32.totalorder %s837, 7
          %s841 = scalar_select %p840, %s837, 7
          %s842 = smul.addr %s839, 8
          %s843 = sadd.s32 %s841, %s842
          %s844 = smul.addr %s843, 8
          %s845 = scalar_lea.vmem %s3, %s844
        $region67: #{light_cnn_forward.2} parent=62 // pred_fallthru
          _
      $region63: #{light_cnn_forward.2} parent=5 // pred_fallthru
        _
    $region6: #{light_cnn_forward.2} parent=1 // loop_footer
      %s13 = sadd.s32 1, %s9
    $region7: #{light_cnn_forward.2} parent=1 // loop_footer_branch
      %8 = sbr.rel target = $region3
    $region8: #{light_cnn_forward.2} parent=1 // loop_exit
      _

// kernel: light_cnn_forward.3
$region0: #{light_cnn_forward.3}
  #allocation0 [shape = 'u32[]', space=smem, size = 0x4, offset = 0x4, fixed_abs, tag = 'smem constant byte address 0x4 - core index']
  #allocation1 [shape = 'u32[72,128]{1,0:T(1,128)}', space=vmem, size = 0x9000, scoped, tag = 'internal scratch']
  %s0 = inlined_call_operand.vmem [shape: f32[2,4,72,256], index: 0, kind: input, shape index: {}]
  %s1 = inlined_call_operand.vmem [shape: f32[16,72], index: 1, kind: input, shape index: {}]
  %s2 = inlined_call_operand.vmem [shape: f32[16,1], index: 2, kind: input, shape index: {}]
  %s3 = inlined_call_operand.vmem [shape: f32[16,32,256], index: 3, kind: input, shape index: {}]
  %s4 = inlined_call_operand.vmem [shape: f32[1,32], index: 4, kind: input, shape index: {}]
  %s5 = inlined_call_operand.vmem [shape: f32[32,2], index: 5, kind: input, shape index: {}]
  %s6 = inlined_call_operand.vmem [shape: f32[1,2], index: 6, kind: input, shape index: {}]
  %s7 = inlined_call_operand.hbm [shape: f32[2,1,2], index: 7, kind: output, shape index: {}]
  %s8 = sld [smem:[#allocation0]]
  $region61: #{light_cnn_forward.3} parent=0
    _
  %s10 = ssub.s32 1, %s8
  %s11 = scalar_select 0, %s10, %s8
  $region1: #{light_cnn_forward.3} parent=0
    #allocation2 [shape = 'u8[1024]{0}', space=vmem, size = 0x400, scoped, tag = 'output window, operand 0']
    #allocation3 [shape = 's32[2]{0}', space=sflag, size = 0x8, scoped, tag = 'scoped memory for light_cnn_forward.3']
    %12 = vsyncpa [#allocation3], 0
    %s13 = scalar_lea.sflag [#allocation3], 1
    %14 = vsyncpa %s13, 0
    loop: start=0, step=1, limit=4
    $region2: #{light_cnn_forward.3} parent=1 // loop_pre_header
      _
    $region3: #{light_cnn_forward.3} parent=1 // loop_header
      %s16 = sphi 0, %s20
      %p17 = scmp.ge.s32.totalorder %s16, 4
      %s26 = sphi 0, %s28
      %s29 = sphi 0, %s26
      %s30 = sphi 0, %s29
      %s46 = sphi 0, %s30
      %s50 = sphi 0, %s50
      %s52 = sphi 0, %s50
      %s53 = sphi 0, %s52
      %s67 = sphi 0, %s53
      %s71 = sphi 0, %s71
      %s73 = sphi 0, %s71
      %s74 = sphi 0, %s73
      %s88 = sphi 0, %s74
      %s92 = sphi 0, %s92
      %s94 = sphi 0, %s92
      %s95 = sphi 0, %s94
      %s109 = sphi 0, %s95
      %s113 = sphi 0, %s113
      %s115 = sphi 0, %s113
      %s116 = sphi 0, %s115
      %s130 = sphi 0, %s116
      %s134 = sphi 0, %s134
      %s136 = sphi 0, %s134
      %s137 = sphi 0, %s136
      %s151 = sphi 0, %s137
      %s155 = sphi 0, %s155
      %s157 = sphi 0, %s155
      %s158 = sphi 0, %s157
      %s172 = sphi 0, %s158
      %s178 = sphi 0, %s180
      %s181 = sphi 0, %s178
      %s182 = sphi 0, %s181
      %s198 = sphi 0, %s182
    $region4: #{light_cnn_forward.3} parent=1 // loop_header_branch
      %19 = sbr.rel (%p17) target = $region8
    $region5: #{light_cnn_forward.3} parent=1 // loop_body
      %s21 = ssub.s32 %s16, 1
      %s22 = ssub.s32 %s16, 2
      %s23 = sadd.s32 %s16, 1
      %s24 = ssub.s32 %s16, %s23
      %p25 = scmp.eq.s32.totalorder %s24, 0
      %s27 = sadd.s32 %s26, 1
      %s28 = scalar_select %p25, %s26, %s27
      %p31 = pneg %p25
      %p32 = scmp.eq.s32.totalorder %s16, 1
      %p33 = por %p31, %p32
      %p34 = scmp.ne.s32.totalorder %s26, %s29
      %p35 = scmp.eq.s32.totalorder %s16, 0
      %p36 = por %p34, %p35
      %p37 = scmp.ne.s32.totalorder %s26, %s29
      %p38 = scmp.eq.s32.totalorder %s21, 1
      %p39 = por %p37, %p38
      %p40 = scmp.ne.s32.totalorder %s29, %s30
      %p41 = scmp.eq.s32.totalorder %s21, 0
      %p42 = por %p40, %p41
      %p43 = scmp.ne.s32.totalorder %s29, %s30
      %p44 = scmp.eq.s32.totalorder %s22, 1
      %p45 = por %p43, %p44
      %p47 = scmp.ne.s32.totalorder %s30, %s46
      %p48 = scmp.eq.s32.totalorder %s22, 0
      %p49 = por %p47, %p48
      %s51 = sadd.s32 %s50, 1
      %p54 = scmp.eq.s32.totalorder %s16, 1
      %p55 = scmp.ne.s32.totalorder %s50, %s52
      %p56 = scmp.eq.s32.totalorder %s16, 0
      %p57 = por %p55, %p56
      %p58 = scmp.ne.s32.totalorder %s50, %s52
      %p59 = scmp.eq.s32.totalorder %s21, 1
      %p60 = por %p58, %p59
      %p61 = scmp.ne.s32.totalorder %s52, %s53
      %p62 = scmp.eq.s32.totalorder %s21, 0
      %p63 = por %p61, %p62
      %p64 = scmp.ne.s32.totalorder %s52, %s53
      %p65 = scmp.eq.s32.totalorder %s22, 1
      %p66 = por %p64, %p65
      %p68 = scmp.ne.s32.totalorder %s53, %s67
      %p69 = scmp.eq.s32.totalorder %s22, 0
      %p70 = por %p68, %p69
      %s72 = sadd.s32 %s71, 1
      %p75 = scmp.eq.s32.totalorder %s16, 1
      %p76 = scmp.ne.s32.totalorder %s71, %s73
      %p77 = scmp.eq.s32.totalorder %s16, 0
      %p78 = por %p76, %p77
      %p79 = scmp.ne.s32.totalorder %s71, %s73
      %p80 = scmp.eq.s32.totalorder %s21, 1
      %p81 = por %p79, %p80
      %p82 = scmp.ne.s32.totalorder %s73, %s74
      %p83 = scmp.eq.s32.totalorder %s21, 0
      %p84 = por %p82, %p83
      %p85 = scmp.ne.s32.totalorder %s73, %s74
      %p86 = scmp.eq.s32.totalorder %s22, 1
      %p87 = por %p85, %p86
      %p89 = scmp.ne.s32.totalorder %s74, %s88
      %p90 = scmp.eq.s32.totalorder %s22, 0
      %p91 = por %p89, %p90
      %s93 = sadd.s32 %s92, 1
      %p96 = scmp.eq.s32.totalorder %s16, 1
      %p97 = scmp.ne.s32.totalorder %s92, %s94
      %p98 = scmp.eq.s32.totalorder %s16, 0
      %p99 = por %p97, %p98
      %p100 = scmp.ne.s32.totalorder %s92, %s94
      %p101 = scmp.eq.s32.totalorder %s21, 1
      %p102 = por %p100, %p101
      %p103 = scmp.ne.s32.totalorder %s94, %s95
      %p104 = scmp.eq.s32.totalorder %s21, 0
      %p105 = por %p103, %p104
      %p106 = scmp.ne.s32.totalorder %s94, %s95
      %p107 = scmp.eq.s32.totalorder %s22, 1
      %p108 = por %p106, %p107
      %p110 = scmp.ne.s32.totalorder %s95, %s109
      %p111 = scmp.eq.s32.totalorder %s22, 0
      %p112 = por %p110, %p111
      %s114 = sadd.s32 %s113, 1
      %p117 = scmp.eq.s32.totalorder %s16, 1
      %p118 = scmp.ne.s32.totalorder %s113, %s115
      %p119 = scmp.eq.s32.totalorder %s16, 0
      %p120 = por %p118, %p119
      %p121 = scmp.ne.s32.totalorder %s113, %s115
      %p122 = scmp.eq.s32.totalorder %s21, 1
      %p123 = por %p121, %p122
      %p124 = scmp.ne.s32.totalorder %s115, %s116
      %p125 = scmp.eq.s32.totalorder %s21, 0
      %p126 = por %p124, %p125
      %p127 = scmp.ne.s32.totalorder %s115, %s116
      %p128 = scmp.eq.s32.totalorder %s22, 1
      %p129 = por %p127, %p128
      %p131 = scmp.ne.s32.totalorder %s116, %s130
      %p132 = scmp.eq.s32.totalorder %s22, 0
      %p133 = por %p131, %p132
      %s135 = sadd.s32 %s134, 1
      %p138 = scmp.eq.s32.totalorder %s16, 1
      %p139 = scmp.ne.s32.totalorder %s134, %s136
      %p140 = scmp.eq.s32.totalorder %s16, 0
      %p141 = por %p139, %p140
      %p142 = scmp.ne.s32.totalorder %s134, %s136
      %p143 = scmp.eq.s32.totalorder %s21, 1
      %p144 = por %p142, %p143
      %p145 = scmp.ne.s32.totalorder %s136, %s137
      %p146 = scmp.eq.s32.totalorder %s21, 0
      %p147 = por %p145, %p146
      %p148 = scmp.ne.s32.totalorder %s136, %s137
      %p149 = scmp.eq.s32.totalorder %s22, 1
      %p150 = por %p148, %p149
      %p152 = scmp.ne.s32.totalorder %s137, %s151
      %p153 = scmp.eq.s32.totalorder %s22, 0
      %p154 = por %p152, %p153
      %s156 = sadd.s32 %s155, 1
      %p159 = scmp.eq.s32.totalorder %s16, 1
      %p160 = scmp.ne.s32.totalorder %s155, %s157
      %p161 = scmp.eq.s32.totalorder %s16, 0
      %p162 = por %p160, %p161
      %p163 = scmp.ne.s32.totalorder %s155, %s157
      %p164 = scmp.eq.s32.totalorder %s21, 1
      %p165 = por %p163, %p164
      %p166 = scmp.ne.s32.totalorder %s157, %s158
      %p167 = scmp.eq.s32.totalorder %s21, 0
      %p168 = por %p166, %p167
      %p169 = scmp.ne.s32.totalorder %s157, %s158
      %p170 = scmp.eq.s32.totalorder %s22, 1
      %p171 = por %p169, %p170
      %p173 = scmp.ne.s32.totalorder %s158, %s172
      %p174 = scmp.eq.s32.totalorder %s22, 0
      %p175 = por %p173, %p174
      %s176 = ssub.s32 %s16, %s23
      %p177 = scmp.eq.s32.totalorder %s176, 0
      %s179 = sadd.s32 %s178, 1
      %s180 = scalar_select %p177, %s178, %s179
      %p183 = pneg %p177
      %p184 = scmp.eq.s32.totalorder %s16, 1
      %p185 = por %p183, %p184
      %p186 = scmp.ne.s32.totalorder %s178, %s181
      %p187 = scmp.eq.s32.totalorder %s16, 0
      %p188 = por %p186, %p187
      %p189 = scmp.ne.s32.totalorder %s178, %s181
      %p190 = scmp.eq.s32.totalorder %s21, 1
      %p191 = por %p189, %p190
      %p192 = scmp.ne.s32.totalorder %s181, %s182
      %p193 = scmp.eq.s32.totalorder %s21, 0
      %p194 = por %p192, %p193
      %p195 = scmp.ne.s32.totalorder %s181, %s182
      %p196 = scmp.eq.s32.totalorder %s22, 1
      %p197 = por %p195, %p196
      %p199 = scmp.ne.s32.totalorder %s182, %s198
      %p200 = scmp.eq.s32.totalorder %s22, 0
      %p201 = por %p199, %p200
      %p202 = scmp.le.s32.totalorder 1, %s16
      %p203 = scmp.lt.s32.totalorder %s16, 3
      %p204 = pnand %p202, %p203
      %p205 = pneg %p204
      // Predicated region
      $region9: #{light_cnn_forward.3} parent=5 // pred_check
        _
      $region10: #{light_cnn_forward.3} parent=5 // pred_check_branch
        %207 = sbr.rel (%p204) target = $region12
      $region11: #{light_cnn_forward.3} parent=5 // pred_region
        %s208 = ssub.s32 %s16, 1
        // Predicated region
        $region13: #{light_cnn_forward.3} parent=11 // pred_check
          %p209 = pneg %p63
        $region14: #{light_cnn_forward.3} parent=11 // pred_check_branch
          %211 = sbr.rel (%p209) target = $region16
        $region15: #{light_cnn_forward.3} parent=11 // pred_region
          _
        $region16: #{light_cnn_forward.3} parent=11 // pred_fallthru
          _
        // Predicated region
        $region17: #{light_cnn_forward.3} parent=11 // pred_check
          %p212 = pneg %p84
        $region18: #{light_cnn_forward.3} parent=11 // pred_check_branch
          %214 = sbr.rel (%p212) target = $region20
        $region19: #{light_cnn_forward.3} parent=11 // pred_region
          _
        $region20: #{light_cnn_forward.3} parent=11 // pred_fallthru
          _
        // Predicated region
        $region21: #{light_cnn_forward.3} parent=11 // pred_check
          %p215 = pneg %p105
        $region22: #{light_cnn_forward.3} parent=11 // pred_check_branch
          %217 = sbr.rel (%p215) target = $region24
        $region23: #{light_cnn_forward.3} parent=11 // pred_region
          _
        $region24: #{light_cnn_forward.3} parent=11 // pred_fallthru
          _
        // Predicated region
        $region25: #{light_cnn_forward.3} parent=11 // pred_check
          %p218 = pneg %p126
        $region26: #{light_cnn_forward.3} parent=11 // pred_check_branch
          %220 = sbr.rel (%p218) target = $region28
        $region27: #{light_cnn_forward.3} parent=11 // pred_region
          _
        $region28: #{light_cnn_forward.3} parent=11 // pred_fallthru
          _
        // Predicated region
        $region29: #{light_cnn_forward.3} parent=11 // pred_check
          %p221 = pneg %p147
        $region30: #{light_cnn_forward.3} parent=11 // pred_check_branch
          %223 = sbr.rel (%p221) target = $region32
        $region31: #{light_cnn_forward.3} parent=11 // pred_region
          _
        $region32: #{light_cnn_forward.3} parent=11 // pred_fallthru
          _
        // Predicated region
        $region33: #{light_cnn_forward.3} parent=11 // pred_check
          %p224 = pneg %p168
        $region34: #{light_cnn_forward.3} parent=11 // pred_check_branch
          %226 = sbr.rel (%p224) target = $region36
        $region35: #{light_cnn_forward.3} parent=11 // pred_region
          _
        $region36: #{light_cnn_forward.3} parent=11 // pred_fallthru
          _
      $region12: #{light_cnn_forward.3} parent=5 // pred_fallthru
        _
      %p227 = scmp.lt.s32.totalorder %s16, 2
      // Predicated region
      $region37: #{light_cnn_forward.3} parent=5 // pred_check
        %p228 = pneg %p227
      $region38: #{light_cnn_forward.3} parent=5 // pred_check_branch
        %230 = sbr.rel (%p228) target = $region40
      $region39: #{light_cnn_forward.3} parent=5 // pred_region
        // Predicated region
        $region41: #{light_cnn_forward.3} parent=39 // pred_check
          %p231 = pneg %p36
        $region42: #{light_cnn_forward.3} parent=39 // pred_check_branch
          %233 = sbr.rel (%p231) target = $region44
        $region43: #{light_cnn_forward.3} parent=39 // pred_region
          %p234 = scmp.lt.s32.totalorder %s16, 1
          %s235 = scalar_select %p234, %s16, 1
          %s236 = smul.addr %s235, 72
          %s237 = smul.addr %s236, 8
          %s238 = scalar_lea.vmem %s0, %s237
        $region44: #{light_cnn_forward.3} parent=39 // pred_fallthru
          _
      $region40: #{light_cnn_forward.3} parent=5 // pred_fallthru
        _
      %p239 = scmp.le.s32.totalorder 1, %s16
      %p240 = scmp.lt.s32.totalorder %s16, 3
      %p241 = pnand %p239, %p240
      %p242 = pneg %p241
      // Predicated region
      $region45: #{light_cnn_forward.3} parent=5 // pred_check
        _
      $region46: #{light_cnn_forward.3} parent=5 // pred_check_branch
        %244 = sbr.rel (%p241) target = $region48
      $region47: #{light_cnn_forward.3} parent=5 // pred_region
        %s245 = ssub.s32 %s16, 1
        %p246 = scmp.lt.s32.totalorder %s21, 1
        %s247 = scalar_select %p246, %s21, 1
        %s248 = smul.addr %s247, 72
        %s249 = smul.addr %s248, 8
        %s250 = scalar_lea.vmem %s0, %s249
        %p251 = pneg %p42
        %p252 = pneg %p39
        %p253 = pneg %p63
        %p254 = pneg %p60
        %p255 = pneg %p84
        %p256 = pneg %p81
        %p257 = pneg %p105
        %p258 = pneg %p102
        %p259 = pneg %p126
        %p260 = pneg %p123
        %p261 = pneg %p147
        %p262 = pneg %p144
        %p263 = pneg %p168
        %p264 = pneg %p165
        %p265 = pneg %p194
        %p266 = pneg %p191
        %s267 = sand.u32 %s181, 1
        %s268 = scalar_lea.sflag [#allocation3], %s267
        %s269 = sand.u32 %s181, 1
        %s270 = scalar_lea.vmem [#allocation2], %s269
        %p271 = scmp.lt.s32.totalorder %s21, 1
        %s272 = scalar_select %p271, %s21, 1
        %s273 = smul.addr %s272, 72
        %s274 = smul.addr %s273, 8
        %s275 = scalar_lea.vmem %s0, %s274
        %v276 = vld [vmem:[%s1] sm:$0xff]
        %v277 = vld [vmem:[%s1 + $0x8] sm:$0xff]
        %v278 = vld [vmem:[%s275] sm:$0xff]
        %v279 = vld [vmem:[%s275 + $0x8] sm:$0xff]
        %v280 = vld [vmem:[%s275 + $0x10] sm:$0xff]
        %v281 = vld [vmem:[%s275 + $0x18] sm:$0xff]
        %v282 = vld [vmem:[%s275 + $0x20] sm:$0xff]
        %v283 = vld [vmem:[%s275 + $0x28] sm:$0xff]
        %v284 = vld [vmem:[%s275 + $0x30] sm:$0xff]
        %v285 = vld [vmem:[%s275 + $0x38] sm:$0xff]
        %v286 = vld [vmem:[%s275 + $0x40] sm:$0xff]
        %v287 = vld [vmem:[%s275 + $0x48] sm:$0xff]
        %v288 = vld [vmem:[%s275 + $0x50] sm:$0xff]
        %v289 = vld [vmem:[%s275 + $0x58] sm:$0xff]
        %v290 = vld [vmem:[%s275 + $0x60] sm:$0xff]
        %v291 = vld [vmem:[%s275 + $0x68] sm:$0xff]
        %v292 = vld [vmem:[%s275 + $0x70] sm:$0xff]
        %v293 = vld [vmem:[%s275 + $0x78] sm:$0xff]
        %v294 = vld [vmem:[%s275 + $0x80] sm:$0xff]
        %v295 = vld [vmem:[%s275 + $0x88] sm:$0xff]
        %vm296 = vcmask 588800
        %v298 = vsel %vm296, %v276, 0
        %v301 = vsel %vm296, %v277, 0
        %303 = vmatpush.msra.mxu0 0.0
        %304 = vmatpush.msra.mxu0 0.0
        %305 = vmatpush.msra.mxu0 0.0
        %306 = vmatpush.msra.mxu0 0.0
        %307 = vmatpush.msra.mxu0 0.0
        %308 = vmatpush.msra.mxu0 0.0
        %309 = vmatpush.msra.mxu0 0.0
        %310 = vmatpush.msra.mxu0 %v294
        %311 = vmatpush.msra.mxu0 %v292
        %312 = vmatpush.msra.mxu0 %v290
        %313 = vmatpush.msra.mxu0 %v288
        %314 = vmatpush.msra.mxu0 %v286
        %315 = vmatpush.msra.mxu0 %v284
        %316 = vmatpush.msra.mxu0 %v282
        %317 = vmatpush.msra.mxu0 %v280
        %318 = vmatpush.msra.mxu0 %v278
        %319 = vmatmul.f32.gmra.mxu0 %v298
        %v320 = vpop.f32.mrf.mxu0
        %v321 = vadd.f32 0.0, %v320
        %322 = vmatmul.f32.gmra.mxu0 %v301
        %v323 = vpop.f32.mrf.mxu0
        %v324 = vadd.f32 0.0, %v323
        %325 = vdwg.mxu0
        %326 = vmatpush.msra.mxu0 0.0
        %327 = vmatpush.msra.mxu0 0.0
        %328 = vmatpush.msra.mxu0 0.0
        %329 = vmatpush.msra.mxu0 0.0
        %330 = vmatpush.msra.mxu0 0.0
        %331 = vmatpush.msra.mxu0 0.0
        %332 = vmatpush.msra.mxu0 0.0
        %333 = vmatpush.msra.mxu0 %v295
        %334 = vmatpush.msra.mxu0 %v293
        %335 = vmatpush.msra.mxu0 %v291
        %336 = vmatpush.msra.mxu0 %v289
        %337 = vmatpush.msra.mxu0 %v287
        %338 = vmatpush.msra.mxu0 %v285
        %339 = vmatpush.msra.mxu0 %v283
        %340 = vmatpush.msra.mxu0 %v281
        %341 = vmatpush.msra.mxu0 %v279
        %342 = vmatmul.f32.gmra.mxu0 %v298
        %v343 = vpop.f32.mrf.mxu0
        %v344 = vadd.f32 0.0, %v343
        %345 = vmatmul.f32.gmra.mxu0 %v301
        %v346 = vpop.f32.mrf.mxu0
        %v347 = vadd.f32 0.0, %v346
        %348 = vdwg.mxu0
        %s349 = scalar_lea.vmem %s275, 144
        %v350 = vld [vmem:[%s349] sm:$0xff]
        %v351 = vld [vmem:[%s349 + $0x8] sm:$0xff]
        %v352 = vld [vmem:[%s349 + $0x10] sm:$0xff]
        %v353 = vld [vmem:[%s349 + $0x18] sm:$0xff]
        %v354 = vld [vmem:[%s349 + $0x20] sm:$0xff]
        %v355 = vld [vmem:[%s349 + $0x28] sm:$0xff]
        %v356 = vld [vmem:[%s349 + $0x30] sm:$0xff]
        %v357 = vld [vmem:[%s349 + $0x38] sm:$0xff]
        %v358 = vld [vmem:[%s349 + $0x40] sm:$0xff]
        %v359 = vld [vmem:[%s349 + $0x48] sm:$0xff]
        %v360 = vld [vmem:[%s349 + $0x50] sm:$0xff]
        %v361 = vld [vmem:[%s349 + $0x58] sm:$0xff]
        %v362 = vld [vmem:[%s349 + $0x60] sm:$0xff]
        %v363 = vld [vmem:[%s349 + $0x68] sm:$0xff]
        %v364 = vld [vmem:[%s349 + $0x70] sm:$0xff]
        %v365 = vld [vmem:[%s349 + $0x78] sm:$0xff]
        %v366 = vld [vmem:[%s349 + $0x80] sm:$0xff]
        %v367 = vld [vmem:[%s349 + $0x88] sm:$0xff]
        %368 = vmatpush.msra.mxu0 0.0
        %369 = vmatpush.msra.mxu0 0.0
        %370 = vmatpush.msra.mxu0 0.0
        %371 = vmatpush.msra.mxu0 0.0
        %372 = vmatpush.msra.mxu0 0.0
        %373 = vmatpush.msra.mxu0 0.0
        %374 = vmatpush.msra.mxu0 0.0
        %375 = vmatpush.msra.mxu0 %v366
        %376 = vmatpush.msra.mxu0 %v364
        %377 = vmatpush.msra.mxu0 %v362
        %378 = vmatpush.msra.mxu0 %v360
        %379 = vmatpush.msra.mxu0 %v358
        %380 = vmatpush.msra.mxu0 %v356
        %381 = vmatpush.msra.mxu0 %v354
        %382 = vmatpush.msra.mxu0 %v352
        %383 = vmatpush.msra.mxu0 %v350
        %384 = vmatmul.f32.gmra.mxu0 %v298
        %v385 = vpop.f32.mrf.mxu0
        %v386 = vadd.f32 0.0, %v385
        %387 = vmatmul.f32.gmra.mxu0 %v301
        %v388 = vpop.f32.mrf.mxu0
        %v389 = vadd.f32 0.0, %v388
        %390 = vdwg.mxu0
        %391 = vmatpush.msra.mxu0 0.0
        %392 = vmatpush.msra.mxu0 0.0
        %393 = vmatpush.msra.mxu0 0.0
        %394 = vmatpush.msra.mxu0 0.0
        %395 = vmatpush.msra.mxu0 0.0
        %396 = vmatpush.msra.mxu0 0.0
        %397 = vmatpush.msra.mxu0 0.0
        %398 = vmatpush.msra.mxu0 %v367
        %399 = vmatpush.msra.mxu0 %v365
        %400 = vmatpush.msra.mxu0 %v363
        %401 = vmatpush.msra.mxu0 %v361
        %402 = vmatpush.msra.mxu0 %v359
        %403 = vmatpush.msra.mxu0 %v357
        %404 = vmatpush.msra.mxu0 %v355
        %405 = vmatpush.msra.mxu0 %v353
        %406 = vmatpush.msra.mxu0 %v351
        %407 = vmatmul.f32.gmra.mxu0 %v298
        %v408 = vpop.f32.mrf.mxu0
        %v409 = vadd.f32 0.0, %v408
        %410 = vmatmul.f32.gmra.mxu0 %v301
        %v411 = vpop.f32.mrf.mxu0
        %v412 = vadd.f32 0.0, %v411
        %413 = vdwg.mxu0
        %v414 = vmax.f32 %v321, %v386
        %v415 = vmax.f32 %v344, %v409
        %v416 = vmax.f32 %v324, %v389
        %v417 = vmax.f32 %v347, %v412
        %s418 = scalar_lea.vmem %s275, 288
        %v419 = vld [vmem:[%s418] sm:$0xff]
        %v420 = vld [vmem:[%s418 + $0x8] sm:$0xff]
        %v421 = vld [vmem:[%s418 + $0x10] sm:$0xff]
        %v422 = vld [vmem:[%s418 + $0x18] sm:$0xff]
        %v423 = vld [vmem:[%s418 + $0x20] sm:$0xff]
        %v424 = vld [vmem:[%s418 + $0x28] sm:$0xff]
        %v425 = vld [vmem:[%s418 + $0x30] sm:$0xff]
        %v426 = vld [vmem:[%s418 + $0x38] sm:$0xff]
        %v427 = vld [vmem:[%s418 + $0x40] sm:$0xff]
        %v428 = vld [vmem:[%s418 + $0x48] sm:$0xff]
        %v429 = vld [vmem:[%s418 + $0x50] sm:$0xff]
        %v430 = vld [vmem:[%s418 + $0x58] sm:$0xff]
        %v431 = vld [vmem:[%s418 + $0x60] sm:$0xff]
        %v432 = vld [vmem:[%s418 + $0x68] sm:$0xff]
        %v433 = vld [vmem:[%s418 + $0x70] sm:$0xff]
        %v434 = vld [vmem:[%s418 + $0x78] sm:$0xff]
        %v435 = vld [vmem:[%s418 + $0x80] sm:$0xff]
        %v436 = vld [vmem:[%s418 + $0x88] sm:$0xff]
        %437 = vmatpush.msra.mxu0 0.0
        %438 = vmatpush.msra.mxu0 0.0
        %439 = vmatpush.msra.mxu0 0.0
        %440 = vmatpush.msra.mxu0 0.0
        %441 = vmatpush.msra.mxu0 0.0
        %442 = vmatpush.msra.mxu0 0.0
        %443 = vmatpush.msra.mxu0 0.0
        %444 = vmatpush.msra.mxu0 %v435
        %445 = vmatpush.msra.mxu0 %v433
        %446 = vmatpush.msra.mxu0 %v431
        %447 = vmatpush.msra.mxu0 %v429
        %448 = vmatpush.msra.mxu0 %v427
        %449 = vmatpush.msra.mxu0 %v425
        %450 = vmatpush.msra.mxu0 %v423
        %451 = vmatpush.msra.mxu0 %v421
        %452 = vmatpush.msra.mxu0 %v419
        %453 = vmatmul.f32.gmra.mxu0 %v298
        %v454 = vpop.f32.mrf.mxu0
        %v455 = vadd.f32 0.0, %v454
        %456 = vmatmul.f32.gmra.mxu0 %v301
        %v457 = vpop.f32.mrf.mxu0
        %v458 = vadd.f32 0.0, %v457
        %459 = vdwg.mxu0
        %460 = vmatpush.msra.mxu0 0.0
        %461 = vmatpush.msra.mxu0 0.0
        %462 = vmatpush.msra.mxu0 0.0
        %463 = vmatpush.msra.mxu0 0.0
        %464 = vmatpush.msra.mxu0 0.0
        %465 = vmatpush.msra.mxu0 0.0
        %466 = vmatpush.msra.mxu0 0.0
        %467 = vmatpush.msra.mxu0 %v436
        %468 = vmatpush.msra.mxu0 %v434
        %469 = vmatpush.msra.mxu0 %v432
        %470 = vmatpush.msra.mxu0 %v430
        %471 = vmatpush.msra.mxu0 %v428
        %472 = vmatpush.msra.mxu0 %v426
        %473 = vmatpush.msra.mxu0 %v424
        %474 = vmatpush.msra.mxu0 %v422
        %475 = vmatpush.msra.mxu0 %v420
        %476 = vmatmul.f32.gmra.mxu0 %v298
        %v477 = vpop.f32.mrf.mxu0
        %v478 = vadd.f32 0.0, %v477
        %479 = vmatmul.f32.gmra.mxu0 %v301
        %v480 = vpop.f32.mrf.mxu0
        %v481 = vadd.f32 0.0, %v480
        %482 = vdwg.mxu0
        %v483 = vmax.f32 %v414, %v455
        %v484 = vmax.f32 %v415, %v478
        %v485 = vmax.f32 %v416, %v458
        %v486 = vmax.f32 %v417, %v481
        %s487 = scalar_lea.vmem %s275, 432
        %v488 = vld [vmem:[%s487] sm:$0xff]
        %v489 = vld [vmem:[%s487 + $0x8] sm:$0xff]
        %v490 = vld [vmem:[%s487 + $0x10] sm:$0xff]
        %v491 = vld [vmem:[%s487 + $0x18] sm:$0xff]
        %v492 = vld [vmem:[%s487 + $0x20] sm:$0xff]
        %v493 = vld [vmem:[%s487 + $0x28] sm:$0xff]
        %v494 = vld [vmem:[%s487 + $0x30] sm:$0xff]
        %v495 = vld [vmem:[%s487 + $0x38] sm:$0xff]
        %v496 = vld [vmem:[%s487 + $0x40] sm:$0xff]
        %v497 = vld [vmem:[%s487 + $0x48] sm:$0xff]
        %v498 = vld [vmem:[%s487 + $0x50] sm:$0xff]
        %v499 = vld [vmem:[%s487 + $0x58] sm:$0xff]
        %v500 = vld [vmem:[%s487 + $0x60] sm:$0xff]
        %v501 = vld [vmem:[%s487 + $0x68] sm:$0xff]
        %v502 = vld [vmem:[%s487 + $0x70] sm:$0xff]
        %v503 = vld [vmem:[%s487 + $0x78] sm:$0xff]
        %v504 = vld [vmem:[%s487 + $0x80] sm:$0xff]
        %v505 = vld [vmem:[%s487 + $0x88] sm:$0xff]
        %506 = vmatpush.msra.mxu0 0.0
        %507 = vmatpush.msra.mxu0 0.0
        %508 = vmatpush.msra.mxu0 0.0
        %509 = vmatpush.msra.mxu0 0.0
        %510 = vmatpush.msra.mxu0 0.0
        %511 = vmatpush.msra.mxu0 0.0
        %512 = vmatpush.msra.mxu0 0.0
        %513 = vmatpush.msra.mxu0 %v504
        %514 = vmatpush.msra.mxu0 %v502
        %515 = vmatpush.msra.mxu0 %v500
        %516 = vmatpush.msra.mxu0 %v498
        %517 = vmatpush.msra.mxu0 %v496
        %518 = vmatpush.msra.mxu0 %v494
        %519 = vmatpush.msra.mxu0 %v492
        %520 = vmatpush.msra.mxu0 %v490
        %521 = vmatpush.msra.mxu0 %v488
        %522 = vmatmul.f32.gmra.mxu0 %v298
        %v523 = vpop.f32.mrf.mxu0
        %v524 = vadd.f32 0.0, %v523
        %525 = vmatmul.f32.gmra.mxu0 %v301
        %v526 = vpop.f32.mrf.mxu0
        %v527 = vadd.f32 0.0, %v526
        %528 = vdwg.mxu0
        %529 = vmatpush.msra.mxu0 0.0
        %530 = vmatpush.msra.mxu0 0.0
        %531 = vmatpush.msra.mxu0 0.0
        %532 = vmatpush.msra.mxu0 0.0
        %533 = vmatpush.msra.mxu0 0.0
        %534 = vmatpush.msra.mxu0 0.0
        %535 = vmatpush.msra.mxu0 0.0
        %536 = vmatpush.msra.mxu0 %v505
        %537 = vmatpush.msra.mxu0 %v503
        %538 = vmatpush.msra.mxu0 %v501
        %539 = vmatpush.msra.mxu0 %v499
        %540 = vmatpush.msra.mxu0 %v497
        %541 = vmatpush.msra.mxu0 %v495
        %542 = vmatpush.msra.mxu0 %v493
        %543 = vmatpush.msra.mxu0 %v491
        %544 = vmatpush.msra.mxu0 %v489
        %545 = vmatmul.f32.gmra.mxu0 %v298
        %v546 = vpop.f32.mrf.mxu0
        %v547 = vadd.f32 0.0, %v546
        %548 = vmatmul.f32.gmra.mxu0 %v301
        %v549 = vpop.f32.mrf.mxu0
        %v550 = vadd.f32 0.0, %v549
        %551 = vdwg.mxu0
        %v552 = vmax.f32 %v483, %v524
        %v553 = vmax.f32 %v484, %v547
        %v554 = vmax.f32 %v485, %v527
        %v555 = vmax.f32 %v486, %v550
        %v556 = vld [vmem:[%s2] sm:$0xff]
        %v557 = vld [vmem:[%s2 + $0x8] sm:$0xff]
        %559 = vset.pattern.permute.xlu0 0
        %560 = vperm.xlu0 %559, %v556
        %v561 = vpop.permute.xlu0 %560
        %564 = vset.pattern.permute.xlu0 0
        %565 = vperm.xlu0 %564, %v557
        %v566 = vpop.permute.xlu0 %565
        %v568 = vadd.f32 %v552, %v561
        %v569 = vadd.f32 %v553, %v561
        %v570 = vadd.f32 %v554, %v566
        %v571 = vadd.f32 %v555, %v566
        %v572 = vmax.f32 %v568, 0.0
        %v573 = vmax.f32 %v569, 0.0
        %v574 = vmax.f32 %v570, 0.0
        %v575 = vmax.f32 %v571, 0.0
        %v576 = vld [vmem:[%s4] sm:$0x1]
        %v577 = vld [vmem:[%s3] sm:$0xff]
        %v578 = vld [vmem:[%s3 + $0x8] sm:$0xff]
        %v579 = vld [vmem:[%s3 + $0x10] sm:$0xff]
        %v580 = vld [vmem:[%s3 + $0x18] sm:$0xff]
        %v581 = vld [vmem:[%s3 + $0x20] sm:$0xff]
        %v582 = vld [vmem:[%s3 + $0x28] sm:$0xff]
        %v583 = vld [vmem:[%s3 + $0x30] sm:$0xff]
        %v584 = vld [vmem:[%s3 + $0x38] sm:$0xff]
        %585 = vmatpush.xpose.msra.mxu0 0.0
        %586 = vmatpush.xpose.msra.mxu0 0.0
        %587 = vmatpush.xpose.msra.mxu0 0.0
        %588 = vmatpush.xpose.msra.mxu0 0.0
        %589 = vmatpush.xpose.msra.mxu0 0.0
        %590 = vmatpush.xpose.msra.mxu0 0.0
        %591 = vmatpush.xpose.msra.mxu0 0.0
        %592 = vmatpush.xpose.msra.mxu0 0.0
        %593 = vmatpush.xpose.msra.mxu0 0.0
        %594 = vmatpush.xpose.msra.mxu0 0.0
        %595 = vmatpush.xpose.msra.mxu0 0.0
        %596 = vmatpush.xpose.msra.mxu0 0.0
        %597 = vmatpush.xpose.msra.mxu0 %v583
        %598 = vmatpush.xpose.msra.mxu0 %v581
        %599 = vmatpush.xpose.msra.mxu0 %v579
        %600 = vmatpush.xpose.msra.mxu0 %v577
        %601 = vmatmul.f32.gmra.mxu0 %v572
        %v602 = vpop.f32.mrf.mxu0
        %v603 = vadd.f32 0.0, %v602
        %604 = vdwg.mxu0
        %605 = vmatpush.xpose.msra.mxu0 0.0
        %606 = vmatpush.xpose.msra.mxu0 0.0
        %607 = vmatpush.xpose.msra.mxu0 0.0
        %608 = vmatpush.xpose.msra.mxu0 0.0
        %609 = vmatpush.xpose.msra.mxu0 0.0
        %610 = vmatpush.xpose.msra.mxu0 0.0
        %611 = vmatpush.xpose.msra.mxu0 0.0
        %612 = vmatpush.xpose.msra.mxu0 0.0
        %613 = vmatpush.xpose.msra.mxu0 0.0
        %614 = vmatpush.xpose.msra.mxu0 0.0
        %615 = vmatpush.xpose.msra.mxu0 0.0
        %616 = vmatpush.xpose.msra.mxu0 0.0
        %617 = vmatpush.xpose.msra.mxu0 %v584
        %618 = vmatpush.xpose.msra.mxu0 %v582
        %619 = vmatpush.xpose.msra.mxu0 %v580
        %620 = vmatpush.xpose.msra.mxu0 %v578
        %621 = vmatmul.f32.gmra.mxu0 %v573
        %v622 = vpop.f32.mrf.mxu0
        %v623 = vadd.f32 %v603, %v622
        %624 = vdwg.mxu0
        %v625 = vadd.f32 %v576, %v623
        %s626 = scalar_lea.vmem %s3, 64
        %v627 = vld [vmem:[%s626] sm:$0xff]
        %v628 = vld [vmem:[%s626 + $0x8] sm:$0xff]
        %v629 = vld [vmem:[%s626 + $0x10] sm:$0xff]
        %v630 = vld [vmem:[%s626 + $0x18] sm:$0xff]
        %v631 = vld [vmem:[%s626 + $0x20] sm:$0xff]
        %v632 = vld [vmem:[%s626 + $0x28] sm:$0xff]
        %v633 = vld [vmem:[%s626 + $0x30] sm:$0xff]
        %v634 = vld [vmem:[%s626 + $0x38] sm:$0xff]
        %v637 = vrot.slane %v572, 1
        %v638 = vrot.slane %v573, 1
        %641 = vmatpush.xpose.msra.mxu0 0.0
        %642 = vmatpush.xpose.msra.mxu0 0.0
        %643 = vmatpush.xpose.msra.mxu0 0.0
        %644 = vmatpush.xpose.msra.mxu0 0.0
        %645 = vmatpush.xpose.msra.mxu0 0.0
        %646 = vmatpush.xpose.msra.mxu0 0.0
        %647 = vmatpush.xpose.msra.mxu0 0.0
        %648 = vmatpush.xpose.msra.mxu0 0.0
        %649 = vmatpush.xpose.msra.mxu0 0.0
        %650 = vmatpush.xpose.msra.mxu0 0.0
        %651 = vmatpush.xpose.msra.mxu0 0.0
        %652 = vmatpush.xpose.msra.mxu0 0.0
        %653 = vmatpush.xpose.msra.mxu0 %v633
        %654 = vmatpush.xpose.msra.mxu0 %v631
        %655 = vmatpush.xpose.msra.mxu0 %v629
        %656 = vmatpush.xpose.msra.mxu0 %v627
        %657 = vmatmul.f32.gmra.mxu0 %v637
        %v658 = vpop.f32.mrf.mxu0
        %v659 = vadd.f32 0.0, %v658
        %660 = vdwg.mxu0
        %661 = vmatpush.xpose.msra.mxu0 0.0
        %662 = vmatpush.xpose.msra.mxu0 0.0
        %663 = vmatpush.xpose.msra.mxu0 0.0
        %664 = vmatpush.xpose.msra.mxu0 0.0
        %665 = vmatpush.xpose.msra.mxu0 0.0
        %666 = vmatpush.xpose.msra.mxu0 0.0
        %667 = vmatpush.xpose.msra.mxu0 0.0
        %668 = vmatpush.xpose.msra.mxu0 0.0
        %669 = vmatpush.xpose.msra.mxu0 0.0
        %670 = vmatpush.xpose.msra.mxu0 0.0
        %671 = vmatpush.xpose.msra.mxu0 0.0
        %672 = vmatpush.xpose.msra.mxu0 0.0
        %673 = vmatpush.xpose.msra.mxu0 %v634
        %674 = vmatpush.xpose.msra.mxu0 %v632
        %675 = vmatpush.xpose.msra.mxu0 %v630
        %676 = vmatpush.xpose.msra.mxu0 %v628
        %677 = vmatmul.f32.gmra.mxu0 %v638
        %v678 = vpop.f32.mrf.mxu0
        %v679 = vadd.f32 %v659, %v678
        %680 = vdwg.mxu0
        %v681 = vadd.f32 %v625, %v679
        %s682 = scalar_lea.vmem %s3, 128
        %v683 = vld [vmem:[%s682] sm:$0xff]
        %v684 = vld [vmem:[%s682 + $0x8] sm:$0xff]
        %v685 = vld [vmem:[%s682 + $0x10] sm:$0xff]
        %v686 = vld [vmem:[%s682 + $0x18] sm:$0xff]
        %v687 = vld [vmem:[%s682 + $0x20] sm:$0xff]
        %v688 = vld [vmem:[%s682 + $0x28] sm:$0xff]
        %v689 = vld [vmem:[%s682 + $0x30] sm:$0xff]
        %v690 = vld [vmem:[%s682 + $0x38] sm:$0xff]
        %v691 = vrot.slane %v572, 2
        %v692 = vrot.slane %v573, 2
        %695 = vmatpush.xpose.msra.mxu0 0.0
        %696 = vmatpush.xpose.msra.mxu0 0.0
        %697 = vmatpush.xpose.msra.mxu0 0.0
        %698 = vmatpush.xpose.msra.mxu0 0.0
        %699 = vmatpush.xpose.msra.mxu0 0.0
        %700 = vmatpush.xpose.msra.mxu0 0.0
        %701 = vmatpush.xpose.msra.mxu0 0.0
        %702 = vmatpush.xpose.msra.mxu0 0.0
        %703 = vmatpush.xpose.msra.mxu0 0.0
        %704 = vmatpush.xpose.msra.mxu0 0.0
        %705 = vmatpush.xpose.msra.mxu0 0.0
        %706 = vmatpush.xpose.msra.mxu0 0.0
        %707 = vmatpush.xpose.msra.mxu0 %v689
        %708 = vmatpush.xpose.msra.mxu0 %v687
        %709 = vmatpush.xpose.msra.mxu0 %v685
        %710 = vmatpush.xpose.msra.mxu0 %v683
        %711 = vmatmul.f32.gmra.mxu0 %v691
        %v712 = vpop.f32.mrf.mxu0
        %v713 = vadd.f32 0.0, %v712
        %714 = vdwg.mxu0
        %715 = vmatpush.xpose.msra.mxu0 0.0
        %716 = vmatpush.xpose.msra.mxu0 0.0
        %717 = vmatpush.xpose.msra.mxu0 0.0
        %718 = vmatpush.xpose.msra.mxu0 0.0
        %719 = vmatpush.xpose.msra.mxu0 0.0
        %720 = vmatpush.xpose.msra.mxu0 0.0
        %721 = vmatpush.xpose.msra.mxu0 0.0
        %722 = vmatpush.xpose.msra.mxu0 0.0
        %723 = vmatpush.xpose.msra.mxu0 0.0
        %724 = vmatpush.xpose.msra.mxu0 0.0
        %725 = vmatpush.xpose.msra.mxu0 0.0
        %726 = vmatpush.xpose.msra.mxu0 0.0
        %727 = vmatpush.xpose.msra.mxu0 %v690
        %728 = vmatpush.xpose.msra.mxu0 %v688
        %729 = vmatpush.xpose.msra.mxu0 %v686
        %730 = vmatpush.xpose.msra.mxu0 %v684
        %731 = vmatmul.f32.gmra.mxu0 %v692
        %v732 = vpop.f32.mrf.mxu0
        %v733 = vadd.f32 %v713, %v732
        %734 = vdwg.mxu0
        %v735 = vadd.f32 %v681, %v733
        %s736 = scalar_lea.vmem %s3, 192
        %v737 = vld [vmem:[%s736] sm:$0xff]
        %v738 = vld [vmem:[%s736 + $0x8] sm:$0xff]
        %v739 = vld [vmem:[%s736 + $0x10] sm:$0xff]
        %v740 = vld [vmem:[%s736 + $0x18] sm:$0xff]
        %v741 = vld [vmem:[%s736 + $0x20] sm:$0xff]
        %v742 = vld [vmem:[%s736 + $0x28] sm:$0xff]
        %v743 = vld [vmem:[%s736 + $0x30] sm:$0xff]
        %v744 = vld [vmem:[%s736 + $0x38] sm:$0xff]
        %v745 = vrot.slane %v572, 3
        %v746 = vrot.slane %v573, 3
        %749 = vmatpush.xpose.msra.mxu0 0.0
        %750 = vmatpush.xpose.msra.mxu0 0.0
        %751 = vmatpush.xpose.msra.mxu0 0.0
        %752 = vmatpush.xpose.msra.mxu0 0.0
        %753 = vmatpush.xpose.msra.mxu0 0.0
        %754 = vmatpush.xpose.msra.mxu0 0.0
        %755 = vmatpush.xpose.msra.mxu0 0.0
        %756 = vmatpush.xpose.msra.mxu0 0.0
        %757 = vmatpush.xpose.msra.mxu0 0.0
        %758 = vmatpush.xpose.msra.mxu0 0.0
        %759 = vmatpush.xpose.msra.mxu0 0.0
        %760 = vmatpush.xpose.msra.mxu0 0.0
        %761 = vmatpush.xpose.msra.mxu0 %v743
        %762 = vmatpush.xpose.msra.mxu0 %v741
        %763 = vmatpush.xpose.msra.mxu0 %v739
        %764 = vmatpush.xpose.msra.mxu0 %v737
        %765 = vmatmul.f32.gmra.mxu0 %v745
        %v766 = vpop.f32.mrf.mxu0
        %v767 = vadd.f32 0.0, %v766
        %768 = vdwg.mxu0
        %769 = vmatpush.xpose.msra.mxu0 0.0
        %770 = vmatpush.xpose.msra.mxu0 0.0
        %771 = vmatpush.xpose.msra.mxu0 0.0
        %772 = vmatpush.xpose.msra.mxu0 0.0
        %773 = vmatpush.xpose.msra.mxu0 0.0
        %774 = vmatpush.xpose.msra.mxu0 0.0
        %775 = vmatpush.xpose.msra.mxu0 0.0
        %776 = vmatpush.xpose.msra.mxu0 0.0
        %777 = vmatpush.xpose.msra.mxu0 0.0
        %778 = vmatpush.xpose.msra.mxu0 0.0
        %779 = vmatpush.xpose.msra.mxu0 0.0
        %780 = vmatpush.xpose.msra.mxu0 0.0
        %781 = vmatpush.xpose.msra.mxu0 %v744
        %782 = vmatpush.xpose.msra.mxu0 %v742
        %783 = vmatpush.xpose.msra.mxu0 %v740
        %784 = vmatpush.xpose.msra.mxu0 %v738
        %785 = vmatmul.f32.gmra.mxu0 %v746
        %v786 = vpop.f32.mrf.mxu0
        %v787 = vadd.f32 %v767, %v786
        %788 = vdwg.mxu0
        %v789 = vadd.f32 %v735, %v787
        %s790 = scalar_lea.vmem %s3, 256
        %v791 = vld [vmem:[%s790] sm:$0xff]
        %v792 = vld [vmem:[%s790 + $0x8] sm:$0xff]
        %v793 = vld [vmem:[%s790 + $0x10] sm:$0xff]
        %v794 = vld [vmem:[%s790 + $0x18] sm:$0xff]
        %v795 = vld [vmem:[%s790 + $0x20] sm:$0xff]
        %v796 = vld [vmem:[%s790 + $0x28] sm:$0xff]
        %v797 = vld [vmem:[%s790 + $0x30] sm:$0xff]
        %v798 = vld [vmem:[%s790 + $0x38] sm:$0xff]
        %v799 = vrot.slane %v572, 4
        %v800 = vrot.slane %v573, 4
        %803 = vmatpush.xpose.msra.mxu0 0.0
        %804 = vmatpush.xpose.msra.mxu0 0.0
        %805 = vmatpush.xpose.msra.mxu0 0.0
        %806 = vmatpush.xpose.msra.mxu0 0.0
        %807 = vmatpush.xpose.msra.mxu0 0.0
        %808 = vmatpush.xpose.msra.mxu0 0.0
        %809 = vmatpush.xpose.msra.mxu0 0.0
        %810 = vmatpush.xpose.msra.mxu0 0.0
        %811 = vmatpush.xpose.msra.mxu0 0.0
        %812 = vmatpush.xpose.msra.mxu0 0.0
        %813 = vmatpush.xpose.msra.mxu0 0.0
        %814 = vmatpush.xpose.msra.mxu0 0.0
        %815 = vmatpush.xpose.msra.mxu0 %v797
        %816 = vmatpush.xpose.msra.mxu0 %v795
        %817 = vmatpush.xpose.msra.mxu0 %v793
        %818 = vmatpush.xpose.msra.mxu0 %v791
        %819 = vmatmul.f32.gmra.mxu0 %v799
        %v820 = vpop.f32.mrf.mxu0
        %v821 = vadd.f32 0.0, %v820
        %822 = vdwg.mxu0
        %823 = vmatpush.xpose.msra.mxu0 0.0
        %824 = vmatpush.xpose.msra.mxu0 0.0
        %825 = vmatpush.xpose.msra.mxu0 0.0
        %826 = vmatpush.xpose.msra.mxu0 0.0
        %827 = vmatpush.xpose.msra.mxu0 0.0
        %828 = vmatpush.xpose.msra.mxu0 0.0
        %829 = vmatpush.xpose.msra.mxu0 0.0
        %830 = vmatpush.xpose.msra.mxu0 0.0
        %831 = vmatpush.xpose.msra.mxu0 0.0
        %832 = vmatpush.xpose.msra.mxu0 0.0
        %833 = vmatpush.xpose.msra.mxu0 0.0
        %834 = vmatpush.xpose.msra.mxu0 0.0
        %835 = vmatpush.xpose.msra.mxu0 %v798
        %836 = vmatpush.xpose.msra.mxu0 %v796
        %837 = vmatpush.xpose.msra.mxu0 %v794
        %838 = vmatpush.xpose.msra.mxu0 %v792
        %839 = vmatmul.f32.gmra.mxu0 %v800
        %v840 = vpop.f32.mrf.mxu0
        %v841 = vadd.f32 %v821, %v840
        %842 = vdwg.mxu0
        %v843 = vadd.f32 %v789, %v841
        %s844 = scalar_lea.vmem %s3, 320
        %v845 = vld [vmem:[%s844] sm:$0xff]
        %v846 = vld [vmem:[%s844 + $0x8] sm:$0xff]
        %v847 = vld [vmem:[%s844 + $0x10] sm:$0xff]
        %v848 = vld [vmem:[%s844 + $0x18] sm:$0xff]
        %v849 = vld [vmem:[%s844 + $0x20] sm:$0xff]
        %v850 = vld [vmem:[%s844 + $0x28] sm:$0xff]
        %v851 = vld [vmem:[%s844 + $0x30] sm:$0xff]
        %v852 = vld [vmem:[%s844 + $0x38] sm:$0xff]
        %v853 = vrot.slane %v572, 5
        %v854 = vrot.slane %v573, 5
        %857 = vmatpush.xpose.msra.mxu0 0.0
        %858 = vmatpush.xpose.msra.mxu0 0.0
        %859 = vmatpush.xpose.msra.mxu0 0.0
        %860 = vmatpush.xpose.msra.mxu0 0.0
        %861 = vmatpush.xpose.msra.mxu0 0.0
        %862 = vmatpush.xpose.msra.mxu0 0.0
        %863 = vmatpush.xpose.msra.mxu0 0.0
        %864 = vmatpush.xpose.msra.mxu0 0.0
        %865 = vmatpush.xpose.msra.mxu0 0.0
        %866 = vmatpush.xpose.msra.mxu0 0.0
        %867 = vmatpush.xpose.msra.mxu0 0.0
        %868 = vmatpush.xpose.msra.mxu0 0.0
        %869 = vmatpush.xpose.msra.mxu0 %v851
        %870 = vmatpush.xpose.msra.mxu0 %v849
        %871 = vmatpush.xpose.msra.mxu0 %v847
        %872 = vmatpush.xpose.msra.mxu0 %v845
        %873 = vmatmul.f32.gmra.mxu0 %v853
        %v874 = vpop.f32.mrf.mxu0
        %v875 = vadd.f32 0.0, %v874
        %876 = vdwg.mxu0
        %877 = vmatpush.xpose.msra.mxu0 0.0
        %878 = vmatpush.xpose.msra.mxu0 0.0
        %879 = vmatpush.xpose.msra.mxu0 0.0
        %880 = vmatpush.xpose.msra.mxu0 0.0
        %881 = vmatpush.xpose.msra.mxu0 0.0
        %882 = vmatpush.xpose.msra.mxu0 0.0
        %883 = vmatpush.xpose.msra.mxu0 0.0
        %884 = vmatpush.xpose.msra.mxu0 0.0
        %885 = vmatpush.xpose.msra.mxu0 0.0
        %886 = vmatpush.xpose.msra.mxu0 0.0
        %887 = vmatpush.xpose.msra.mxu0 0.0
        %888 = vmatpush.xpose.msra.mxu0 0.0
        %889 = vmatpush.xpose.msra.mxu0 %v852
        %890 = vmatpush.xpose.msra.mxu0 %v850
        %891 = vmatpush.xpose.msra.mxu0 %v848
        %892 = vmatpush.xpose.msra.mxu0 %v846
        %893 = vmatmul.f32.gmra.mxu0 %v854
        %v894 = vpop.f32.mrf.mxu0
        %v895 = vadd.f32 %v875, %v894
        %896 = vdwg.mxu0
        %v897 = vadd.f32 %v843, %v895
        %s898 = scalar_lea.vmem %s3, 384
        %v899 = vld [vmem:[%s898] sm:$0xff]
        %v900 = vld [vmem:[%s898 + $0x8] sm:$0xff]
        %v901 = vld [vmem:[%s898 + $0x10] sm:$0xff]
        %v902 = vld [vmem:[%s898 + $0x18] sm:$0xff]
        %v903 = vld [vmem:[%s898 + $0x20] sm:$0xff]
        %v904 = vld [vmem:[%s898 + $0x28] sm:$0xff]
        %v905 = vld [vmem:[%s898 + $0x30] sm:$0xff]
        %v906 = vld [vmem:[%s898 + $0x38] sm:$0xff]
        %v907 = vrot.slane %v572, 6
        %v908 = vrot.slane %v573, 6
        %911 = vmatpush.xpose.msra.mxu0 0.0
        %912 = vmatpush.xpose.msra.mxu0 0.0
        %913 = vmatpush.xpose.msra.mxu0 0.0
        %914 = vmatpush.xpose.msra.mxu0 0.0
        %915 = vmatpush.xpose.msra.mxu0 0.0
        %916 = vmatpush.xpose.msra.mxu0 0.0
        %917 = vmatpush.xpose.msra.mxu0 0.0
        %918 = vmatpush.xpose.msra.mxu0 0.0
        %919 = vmatpush.xpose.msra.mxu0 0.0
        %920 = vmatpush.xpose.msra.mxu0 0.0
        %921 = vmatpush.xpose.msra.mxu0 0.0
        %922 = vmatpush.xpose.msra.mxu0 0.0
        %923 = vmatpush.xpose.msra.mxu0 %v905
        %924 = vmatpush.xpose.msra.mxu0 %v903
        %925 = vmatpush.xpose.msra.mxu0 %v901
        %926 = vmatpush.xpose.msra.mxu0 %v899
        %927 = vmatmul.f32.gmra.mxu0 %v907
        %v928 = vpop.f32.mrf.mxu0
        %v929 = vadd.f32 0.0, %v928
        %930 = vdwg.mxu0
        %931 = vmatpush.xpose.msra.mxu0 0.0
        %932 = vmatpush.xpose.msra.mxu0 0.0
        %933 = vmatpush.xpose.msra.mxu0 0.0
        %934 = vmatpush.xpose.msra.mxu0 0.0
        %935 = vmatpush.xpose.msra.mxu0 0.0
        %936 = vmatpush.xpose.msra.mxu0 0.0
        %937 = vmatpush.xpose.msra.mxu0 0.0
        %938 = vmatpush.xpose.msra.mxu0 0.0
        %939 = vmatpush.xpose.msra.mxu0 0.0
        %940 = vmatpush.xpose.msra.mxu0 0.0
        %941 = vmatpush.xpose.msra.mxu0 0.0
        %942 = vmatpush.xpose.msra.mxu0 0.0
        %943 = vmatpush.xpose.msra.mxu0 %v906
        %944 = vmatpush.xpose.msra.mxu0 %v904
        %945 = vmatpush.xpose.msra.mxu0 %v902
        %946 = vmatpush.xpose.msra.mxu0 %v900
        %947 = vmatmul.f32.gmra.mxu0 %v908
        %v948 = vpop.f32.mrf.mxu0
        %v949 = vadd.f32 %v929, %v948
        %950 = vdwg.mxu0
        %v951 = vadd.f32 %v897, %v949
        %s952 = scalar_lea.vmem %s3, 448
        %v953 = vld [vmem:[%s952] sm:$0xff]
        %v954 = vld [vmem:[%s952 + $0x8] sm:$0xff]
        %v955 = vld [vmem:[%s952 + $0x10] sm:$0xff]
        %v956 = vld [vmem:[%s952 + $0x18] sm:$0xff]
        %v957 = vld [vmem:[%s952 + $0x20] sm:$0xff]
        %v958 = vld [vmem:[%s952 + $0x28] sm:$0xff]
        %v959 = vld [vmem:[%s952 + $0x30] sm:$0xff]
        %v960 = vld [vmem:[%s952 + $0x38] sm:$0xff]
        %v961 = vrot.slane %v572, 7
        %v962 = vrot.slane %v573, 7
        %965 = vmatpush.xpose.msra.mxu0 0.0
        %966 = vmatpush.xpose.msra.mxu0 0.0
        %967 = vmatpush.xpose.msra.mxu0 0.0
        %968 = vmatpush.xpose.msra.mxu0 0.0
        %969 = vmatpush.xpose.msra.mxu0 0.0
        %970 = vmatpush.xpose.msra.mxu0 0.0
        %971 = vmatpush.xpose.msra.mxu0 0.0
        %972 = vmatpush.xpose.msra.mxu0 0.0
        %973 = vmatpush.xpose.msra.mxu0 0.0
        %974 = vmatpush.xpose.msra.mxu0 0.0
        %975 = vmatpush.xpose.msra.mxu0 0.0
        %976 = vmatpush.xpose.msra.mxu0 0.0
        %977 = vmatpush.xpose.msra.mxu0 %v959
        %978 = vmatpush.xpose.msra.mxu0 %v957
        %979 = vmatpush.xpose.msra.mxu0 %v955
        %980 = vmatpush.xpose.msra.mxu0 %v953
        %981 = vmatmul.f32.gmra.mxu0 %v961
        %v982 = vpop.f32.mrf.mxu0
        %v983 = vadd.f32 0.0, %v982
        %984 = vdwg.mxu0
        %985 = vmatpush.xpose.msra.mxu0 0.0
        %986 = vmatpush.xpose.msra.mxu0 0.0
        %987 = vmatpush.xpose.msra.mxu0 0.0
        %988 = vmatpush.xpose.msra.mxu0 0.0
        %989 = vmatpush.xpose.msra.mxu0 0.0
        %990 = vmatpush.xpose.msra.mxu0 0.0
        %991 = vmatpush.xpose.msra.mxu0 0.0
        %992 = vmatpush.xpose.msra.mxu0 0.0
        %993 = vmatpush.xpose.msra.mxu0 0.0
        %994 = vmatpush.xpose.msra.mxu0 0.0
        %995 = vmatpush.xpose.msra.mxu0 0.0
        %996 = vmatpush.xpose.msra.mxu0 0.0
        %997 = vmatpush.xpose.msra.mxu0 %v960
        %998 = vmatpush.xpose.msra.mxu0 %v958
        %999 = vmatpush.xpose.msra.mxu0 %v956
        %1000 = vmatpush.xpose.msra.mxu0 %v954
        %1001 = vmatmul.f32.gmra.mxu0 %v962
        %v1002 = vpop.f32.mrf.mxu0
        %v1003 = vadd.f32 %v983, %v1002
        %1004 = vdwg.mxu0
        %v1005 = vadd.f32 %v951, %v1003
        %s1006 = scalar_lea.vmem %s3, 512
        %v1007 = vld [vmem:[%s1006] sm:$0xff]
        %v1008 = vld [vmem:[%s1006 + $0x8] sm:$0xff]
        %v1009 = vld [vmem:[%s1006 + $0x10] sm:$0xff]
        %v1010 = vld [vmem:[%s1006 + $0x18] sm:$0xff]
        %v1011 = vld [vmem:[%s1006 + $0x20] sm:$0xff]
        %v1012 = vld [vmem:[%s1006 + $0x28] sm:$0xff]
        %v1013 = vld [vmem:[%s1006 + $0x30] sm:$0xff]
        %v1014 = vld [vmem:[%s1006 + $0x38] sm:$0xff]
        %1015 = vmatpush.xpose.msra.mxu0 0.0
        %1016 = vmatpush.xpose.msra.mxu0 0.0
        %1017 = vmatpush.xpose.msra.mxu0 0.0
        %1018 = vmatpush.xpose.msra.mxu0 0.0
        %1019 = vmatpush.xpose.msra.mxu0 0.0
        %1020 = vmatpush.xpose.msra.mxu0 0.0
        %1021 = vmatpush.xpose.msra.mxu0 0.0
        %1022 = vmatpush.xpose.msra.mxu0 0.0
        %1023 = vmatpush.xpose.msra.mxu0 0.0
        %1024 = vmatpush.xpose.msra.mxu0 0.0
        %1025 = vmatpush.xpose.msra.mxu0 0.0
        %1026 = vmatpush.xpose.msra.mxu0 0.0
        %1027 = vmatpush.xpose.msra.mxu0 %v1013
        %1028 = vmatpush.xpose.msra.mxu0 %v1011
        %1029 = vmatpush.xpose.msra.mxu0 %v1009
        %1030 = vmatpush.xpose.msra.mxu0 %v1007
        %1031 = vmatmul.f32.gmra.mxu0 %v574
        %v1032 = vpop.f32.mrf.mxu0
        %v1033 = vadd.f32 0.0, %v1032
        %1034 = vdwg.mxu0
        %1035 = vmatpush.xpose.msra.mxu0 0.0
        %1036 = vmatpush.xpose.msra.mxu0 0.0
        %1037 = vmatpush.xpose.msra.mxu0 0.0
        %1038 = vmatpush.xpose.msra.mxu0 0.0
        %1039 = vmatpush.xpose.msra.mxu0 0.0
        %1040 = vmatpush.xpose.msra.mxu0 0.0
        %1041 = vmatpush.xpose.msra.mxu0 0.0
        %1042 = vmatpush.xpose.msra.mxu0 0.0
        %1043 = vmatpush.xpose.msra.mxu0 0.0
        %1044 = vmatpush.xpose.msra.mxu0 0.0
        %1045 = vmatpush.xpose.msra.mxu0 0.0
        %1046 = vmatpush.xpose.msra.mxu0 0.0
        %1047 = vmatpush.xpose.msra.mxu0 %v1014
        %1048 = vmatpush.xpose.msra.mxu0 %v1012
        %1049 = vmatpush.xpose.msra.mxu0 %v1010
        %1050 = vmatpush.xpose.msra.mxu0 %v1008
        %1051 = vmatmul.f32.gmra.mxu0 %v575
        %v1052 = vpop.f32.mrf.mxu0
        %v1053 = vadd.f32 %v1033, %v1052
        %1054 = vdwg.mxu0
        %v1055 = vadd.f32 %v1005, %v1053
        %s1056 = scalar_lea.vmem %s3, 576
        %v1057 = vld [vmem:[%s1056] sm:$0xff]
        %v1058 = vld [vmem:[%s1056 + $0x8] sm:$0xff]
        %v1059 = vld [vmem:[%s1056 + $0x10] sm:$0xff]
        %v1060 = vld [vmem:[%s1056 + $0x18] sm:$0xff]
        %v1061 = vld [vmem:[%s1056 + $0x20] sm:$0xff]
        %v1062 = vld [vmem:[%s1056 + $0x28] sm:$0xff]
        %v1063 = vld [vmem:[%s1056 + $0x30] sm:$0xff]
        %v1064 = vld [vmem:[%s1056 + $0x38] sm:$0xff]
        %v1067 = vrot.slane %v574, 1
        %v1068 = vrot.slane %v575, 1
        %1071 = vmatpush.xpose.msra.mxu0 0.0
        %1072 = vmatpush.xpose.msra.mxu0 0.0
        %1073 = vmatpush.xpose.msra.mxu0 0.0
        %1074 = vmatpush.xpose.msra.mxu0 0.0
        %1075 = vmatpush.xpose.msra.mxu0 0.0
        %1076 = vmatpush.xpose.msra.mxu0 0.0
        %1077 = vmatpush.xpose.msra.mxu0 0.0
        %1078 = vmatpush.xpose.msra.mxu0 0.0
        %1079 = vmatpush.xpose.msra.mxu0 0.0
        %1080 = vmatpush.xpose.msra.mxu0 0.0
        %1081 = vmatpush.xpose.msra.mxu0 0.0
        %1082 = vmatpush.xpose.msra.mxu0 0.0
        %1083 = vmatpush.xpose.msra.mxu0 %v1063
        %1084 = vmatpush.xpose.msra.mxu0 %v1061
        %1085 = vmatpush.xpose.msra.mxu0 %v1059
        %1086 = vmatpush.xpose.msra.mxu0 %v1057
        %1087 = vmatmul.f32.gmra.mxu0 %v1067
        %v1088 = vpop.f32.mrf.mxu0
        %v1089 = vadd.f32 0.0, %v1088
        %1090 = vdwg.mxu0
        %1091 = vmatpush.xpose.msra.mxu0 0.0
        %1092 = vmatpush.xpose.msra.mxu0 0.0
        %1093 = vmatpush.xpose.msra.mxu0 0.0
        %1094 = vmatpush.xpose.msra.mxu0 0.0
        %1095 = vmatpush.xpose.msra.mxu0 0.0
        %1096 = vmatpush.xpose.msra.mxu0 0.0
        %1097 = vmatpush.xpose.msra.mxu0 0.0
        %1098 = vmatpush.xpose.msra.mxu0 0.0
        %1099 = vmatpush.xpose.msra.mxu0 0.0
        %1100 = vmatpush.xpose.msra.mxu0 0.0
        %1101 = vmatpush.xpose.msra.mxu0 0.0
        %1102 = vmatpush.xpose.msra.mxu0 0.0
        %1103 = vmatpush.xpose.msra.mxu0 %v1064
        %1104 = vmatpush.xpose.msra.mxu0 %v1062
        %1105 = vmatpush.xpose.msra.mxu0 %v1060
        %1106 = vmatpush.xpose.msra.mxu0 %v1058
        %1107 = vmatmul.f32.gmra.mxu0 %v1068
        %v1108 = vpop.f32.mrf.mxu0
        %v1109 = vadd.f32 %v1089, %v1108
        %1110 = vdwg.mxu0
        %v1111 = vadd.f32 %v1055, %v1109
        %s1112 = scalar_lea.vmem %s3, 640
        %v1113 = vld [vmem:[%s1112] sm:$0xff]
        %v1114 = vld [vmem:[%s1112 + $0x8] sm:$0xff]
        %v1115 = vld [vmem:[%s1112 + $0x10] sm:$0xff]
        %v1116 = vld [vmem:[%s1112 + $0x18] sm:$0xff]
        %v1117 = vld [vmem:[%s1112 + $0x20] sm:$0xff]
        %v1118 = vld [vmem:[%s1112 + $0x28] sm:$0xff]
        %v1119 = vld [vmem:[%s1112 + $0x30] sm:$0xff]
        %v1120 = vld [vmem:[%s1112 + $0x38] sm:$0xff]
        %v1121 = vrot.slane %v574, 2
        %v1122 = vrot.slane %v575, 2
        %1125 = vmatpush.xpose.msra.mxu0 0.0
        %1126 = vmatpush.xpose.msra.mxu0 0.0
        %1127 = vmatpush.xpose.msra.mxu0 0.0
        %1128 = vmatpush.xpose.msra.mxu0 0.0
        %1129 = vmatpush.xpose.msra.mxu0 0.0
        %1130 = vmatpush.xpose.msra.mxu0 0.0
        %1131 = vmatpush.xpose.msra.mxu0 0.0
        %1132 = vmatpush.xpose.msra.mxu0 0.0
        %1133 = vmatpush.xpose.msra.mxu0 0.0
        %1134 = vmatpush.xpose.msra.mxu0 0.0
        %1135 = vmatpush.xpose.msra.mxu0 0.0
        %1136 = vmatpush.xpose.msra.mxu0 0.0
        %1137 = vmatpush.xpose.msra.mxu0 %v1119
        %1138 = vmatpush.xpose.msra.mxu0 %v1117
        %1139 = vmatpush.xpose.msra.mxu0 %v1115
        %1140 = vmatpush.xpose.msra.mxu0 %v1113
        %1141 = vmatmul.f32.gmra.mxu0 %v1121
        %v1142 = vpop.f32.mrf.mxu0
        %v1143 = vadd.f32 0.0, %v1142
        %1144 = vdwg.mxu0
        %1145 = vmatpush.xpose.msra.mxu0 0.0
        %1146 = vmatpush.xpose.msra.mxu0 0.0
        %1147 = vmatpush.xpose.msra.mxu0 0.0
        %1148 = vmatpush.xpose.msra.mxu0 0.0
        %1149 = vmatpush.xpose.msra.mxu0 0.0
        %1150 = vmatpush.xpose.msra.mxu0 0.0
        %1151 = vmatpush.xpose.msra.mxu0 0.0
        %1152 = vmatpush.xpose.msra.mxu0 0.0
        %1153 = vmatpush.xpose.msra.mxu0 0.0
        %1154 = vmatpush.xpose.msra.mxu0 0.0
        %1155 = vmatpush.xpose.msra.mxu0 0.0
        %1156 = vmatpush.xpose.msra.mxu0 0.0
        %1157 = vmatpush.xpose.msra.mxu0 %v1120
        %1158 = vmatpush.xpose.msra.mxu0 %v1118
        %1159 = vmatpush.xpose.msra.mxu0 %v1116
        %1160 = vmatpush.xpose.msra.mxu0 %v1114
        %1161 = vmatmul.f32.gmra.mxu0 %v1122
        %v1162 = vpop.f32.mrf.mxu0
        %v1163 = vadd.f32 %v1143, %v1162
        %1164 = vdwg.mxu0
        %v1165 = vadd.f32 %v1111, %v1163
        %s1166 = scalar_lea.vmem %s3, 704
        %v1167 = vld [vmem:[%s1166] sm:$0xff]
        %v1168 = vld [vmem:[%s1166 + $0x8] sm:$0xff]
        %v1169 = vld [vmem:[%s1166 + $0x10] sm:$0xff]
        %v1170 = vld [vmem:[%s1166 + $0x18] sm:$0xff]
        %v1171 = vld [vmem:[%s1166 + $0x20] sm:$0xff]
        %v1172 = vld [vmem:[%s1166 + $0x28] sm:$0xff]
        %v1173 = vld [vmem:[%s1166 + $0x30] sm:$0xff]
        %v1174 = vld [vmem:[%s1166 + $0x38] sm:$0xff]
        %v1175 = vrot.slane %v574, 3
        %v1176 = vrot.slane %v575, 3
        %1179 = vmatpush.xpose.msra.mxu0 0.0
        %1180 = vmatpush.xpose.msra.mxu0 0.0
        %1181 = vmatpush.xpose.msra.mxu0 0.0
        %1182 = vmatpush.xpose.msra.mxu0 0.0
        %1183 = vmatpush.xpose.msra.mxu0 0.0
        %1184 = vmatpush.xpose.msra.mxu0 0.0
        %1185 = vmatpush.xpose.msra.mxu0 0.0
        %1186 = vmatpush.xpose.msra.mxu0 0.0
        %1187 = vmatpush.xpose.msra.mxu0 0.0
        %1188 = vmatpush.xpose.msra.mxu0 0.0
        %1189 = vmatpush.xpose.msra.mxu0 0.0
        %1190 = vmatpush.xpose.msra.mxu0 0.0
        %1191 = vmatpush.xpose.msra.mxu0 %v1173
        %1192 = vmatpush.xpose.msra.mxu0 %v1171
        %1193 = vmatpush.xpose.msra.mxu0 %v1169
        %1194 = vmatpush.xpose.msra.mxu0 %v1167
        %1195 = vmatmul.f32.gmra.mxu0 %v1175
        %v1196 = vpop.f32.mrf.mxu0
        %v1197 = vadd.f32 0.0, %v1196
        %1198 = vdwg.mxu0
        %1199 = vmatpush.xpose.msra.mxu0 0.0
        %1200 = vmatpush.xpose.msra.mxu0 0.0
        %1201 = vmatpush.xpose.msra.mxu0 0.0
        %1202 = vmatpush.xpose.msra.mxu0 0.0
        %1203 = vmatpush.xpose.msra.mxu0 0.0
        %1204 = vmatpush.xpose.msra.mxu0 0.0
        %1205 = vmatpush.xpose.msra.mxu0 0.0
        %1206 = vmatpush.xpose.msra.mxu0 0.0
        %1207 = vmatpush.xpose.msra.mxu0 0.0
        %1208 = vmatpush.xpose.msra.mxu0 0.0
        %1209 = vmatpush.xpose.msra.mxu0 0.0
        %1210 = vmatpush.xpose.msra.mxu0 0.0
        %1211 = vmatpush.xpose.msra.mxu0 %v1174
        %1212 = vmatpush.xpose.msra.mxu0 %v1172
        %1213 = vmatpush.xpose.msra.mxu0 %v1170
        %1214 = vmatpush.xpose.msra.mxu0 %v1168
        %1215 = vmatmul.f32.gmra.mxu0 %v1176
        %v1216 = vpop.f32.mrf.mxu0
        %v1217 = vadd.f32 %v1197, %v1216
        %1218 = vdwg.mxu0
        %v1219 = vadd.f32 %v1165, %v1217
        %s1220 = scalar_lea.vmem %s3, 768
        %v1221 = vld [vmem:[%s1220] sm:$0xff]
        %v1222 = vld [vmem:[%s1220 + $0x8] sm:$0xff]
        %v1223 = vld [vmem:[%s1220 + $0x10] sm:$0xff]
        %v1224 = vld [vmem:[%s1220 + $0x18] sm:$0xff]
        %v1225 = vld [vmem:[%s1220 + $0x20] sm:$0xff]
        %v1226 = vld [vmem:[%s1220 + $0x28] sm:$0xff]
        %v1227 = vld [vmem:[%s1220 + $0x30] sm:$0xff]
        %v1228 = vld [vmem:[%s1220 + $0x38] sm:$0xff]
        %v1229 = vrot.slane %v574, 4
        %v1230 = vrot.slane %v575, 4
        %1233 = vmatpush.xpose.msra.mxu0 0.0
        %1234 = vmatpush.xpose.msra.mxu0 0.0
        %1235 = vmatpush.xpose.msra.mxu0 0.0
        %1236 = vmatpush.xpose.msra.mxu0 0.0
        %1237 = vmatpush.xpose.msra.mxu0 0.0
        %1238 = vmatpush.xpose.msra.mxu0 0.0
        %1239 = vmatpush.xpose.msra.mxu0 0.0
        %1240 = vmatpush.xpose.msra.mxu0 0.0
        %1241 = vmatpush.xpose.msra.mxu0 0.0
        %1242 = vmatpush.xpose.msra.mxu0 0.0
        %1243 = vmatpush.xpose.msra.mxu0 0.0
        %1244 = vmatpush.xpose.msra.mxu0 0.0
        %1245 = vmatpush.xpose.msra.mxu0 %v1227
        %1246 = vmatpush.xpose.msra.mxu0 %v1225
        %1247 = vmatpush.xpose.msra.mxu0 %v1223
        %1248 = vmatpush.xpose.msra.mxu0 %v1221
        %1249 = vmatmul.f32.gmra.mxu0 %v1229
        %v1250 = vpop.f32.mrf.mxu0
        %v1251 = vadd.f32 0.0, %v1250
        %1252 = vdwg.mxu0
        %1253 = vmatpush.xpose.msra.mxu0 0.0
        %1254 = vmatpush.xpose.msra.mxu0 0.0
        %1255 = vmatpush.xpose.msra.mxu0 0.0
        %1256 = vmatpush.xpose.msra.mxu0 0.0
        %1257 = vmatpush.xpose.msra.mxu0 0.0
        %1258 = vmatpush.xpose.msra.mxu0 0.0
        %1259 = vmatpush.xpose.msra.mxu0 0.0
        %1260 = vmatpush.xpose.msra.mxu0 0.0
        %1261 = vmatpush.xpose.msra.mxu0 0.0
        %1262 = vmatpush.xpose.msra.mxu0 0.0
        %1263 = vmatpush.xpose.msra.mxu0 0.0
        %1264 = vmatpush.xpose.msra.mxu0 0.0
        %1265 = vmatpush.xpose.msra.mxu0 %v1228
        %1266 = vmatpush.xpose.msra.mxu0 %v1226
        %1267 = vmatpush.xpose.msra.mxu0 %v1224
        %1268 = vmatpush.xpose.msra.mxu0 %v1222
        %1269 = vmatmul.f32.gmra.mxu0 %v1230
        %v1270 = vpop.f32.mrf.mxu0
        %v1271 = vadd.f32 %v1251, %v1270
        %1272 = vdwg.mxu0
        %v1273 = vadd.f32 %v1219, %v1271
        %s1274 = scalar_lea.vmem %s3, 832
        %v1275 = vld [vmem:[%s1274] sm:$0xff]
        %v1276 = vld [vmem:[%s1274 + $0x8] sm:$0xff]
        %v1277 = vld [vmem:[%s1274 + $0x10] sm:$0xff]
        %v1278 = vld [vmem:[%s1274 + $0x18] sm:$0xff]
        %v1279 = vld [vmem:[%s1274 + $0x20] sm:$0xff]
        %v1280 = vld [vmem:[%s1274 + $0x28] sm:$0xff]
        %v1281 = vld [vmem:[%s1274 + $0x30] sm:$0xff]
        %v1282 = vld [vmem:[%s1274 + $0x38] sm:$0xff]
        %v1283 = vrot.slane %v574, 5
        %v1284 = vrot.slane %v575, 5
        %1287 = vmatpush.xpose.msra.mxu0 0.0
        %1288 = vmatpush.xpose.msra.mxu0 0.0
        %1289 = vmatpush.xpose.msra.mxu0 0.0
        %1290 = vmatpush.xpose.msra.mxu0 0.0
        %1291 = vmatpush.xpose.msra.mxu0 0.0
        %1292 = vmatpush.xpose.msra.mxu0 0.0
        %1293 = vmatpush.xpose.msra.mxu0 0.0
        %1294 = vmatpush.xpose.msra.mxu0 0.0
        %1295 = vmatpush.xpose.msra.mxu0 0.0
        %1296 = vmatpush.xpose.msra.mxu0 0.0
        %1297 = vmatpush.xpose.msra.mxu0 0.0
        %1298 = vmatpush.xpose.msra.mxu0 0.0
        %1299 = vmatpush.xpose.msra.mxu0 %v1281
        %1300 = vmatpush.xpose.msra.mxu0 %v1279
        %1301 = vmatpush.xpose.msra.mxu0 %v1277
        %1302 = vmatpush.xpose.msra.mxu0 %v1275
        %1303 = vmatmul.f32.gmra.mxu0 %v1283
        %v1304 = vpop.f32.mrf.mxu0
        %v1305 = vadd.f32 0.0, %v1304
        %1306 = vdwg.mxu0
        %1307 = vmatpush.xpose.msra.mxu0 0.0
        %1308 = vmatpush.xpose.msra.mxu0 0.0
        %1309 = vmatpush.xpose.msra.mxu0 0.0
        %1310 = vmatpush.xpose.msra.mxu0 0.0
        %1311 = vmatpush.xpose.msra.mxu0 0.0
        %1312 = vmatpush.xpose.msra.mxu0 0.0
        %1313 = vmatpush.xpose.msra.mxu0 0.0
        %1314 = vmatpush.xpose.msra.mxu0 0.0
        %1315 = vmatpush.xpose.msra.mxu0 0.0
        %1316 = vmatpush.xpose.msra.mxu0 0.0
        %1317 = vmatpush.xpose.msra.mxu0 0.0
        %1318 = vmatpush.xpose.msra.mxu0 0.0
        %1319 = vmatpush.xpose.msra.mxu0 %v1282
        %1320 = vmatpush.xpose.msra.mxu0 %v1280
        %1321 = vmatpush.xpose.msra.mxu0 %v1278
        %1322 = vmatpush.xpose.msra.mxu0 %v1276
        %1323 = vmatmul.f32.gmra.mxu0 %v1284
        %v1324 = vpop.f32.mrf.mxu0
        %v1325 = vadd.f32 %v1305, %v1324
        %1326 = vdwg.mxu0
        %v1327 = vadd.f32 %v1273, %v1325
        %s1328 = scalar_lea.vmem %s3, 896
        %v1329 = vld [vmem:[%s1328] sm:$0xff]
        %v1330 = vld [vmem:[%s1328 + $0x8] sm:$0xff]
        %v1331 = vld [vmem:[%s1328 + $0x10] sm:$0xff]
        %v1332 = vld [vmem:[%s1328 + $0x18] sm:$0xff]
        %v1333 = vld [vmem:[%s1328 + $0x20] sm:$0xff]
        %v1334 = vld [vmem:[%s1328 + $0x28] sm:$0xff]
        %v1335 = vld [vmem:[%s1328 + $0x30] sm:$0xff]
        %v1336 = vld [vmem:[%s1328 + $0x38] sm:$0xff]
        %v1337 = vrot.slane %v574, 6
        %v1338 = vrot.slane %v575, 6
        %1341 = vmatpush.xpose.msra.mxu0 0.0
        %1342 = vmatpush.xpose.msra.mxu0 0.0
        %1343 = vmatpush.xpose.msra.mxu0 0.0
        %1344 = vmatpush.xpose.msra.mxu0 0.0
        %1345 = vmatpush.xpose.msra.mxu0 0.0
        %1346 = vmatpush.xpose.msra.mxu0 0.0
        %1347 = vmatpush.xpose.msra.mxu0 0.0
        %1348 = vmatpush.xpose.msra.mxu0 0.0
        %1349 = vmatpush.xpose.msra.mxu0 0.0
        %1350 = vmatpush.xpose.msra.mxu0 0.0
        %1351 = vmatpush.xpose.msra.mxu0 0.0
        %1352 = vmatpush.xpose.msra.mxu0 0.0
        %1353 = vmatpush.xpose.msra.mxu0 %v1335
        %1354 = vmatpush.xpose.msra.mxu0 %v1333
        %1355 = vmatpush.xpose.msra.mxu0 %v1331
        %1356 = vmatpush.xpose.msra.mxu0 %v1329
        %1357 = vmatmul.f32.gmra.mxu0 %v1337
        %v1358 = vpop.f32.mrf.mxu0
        %v1359 = vadd.f32 0.0, %v1358
        %1360 = vdwg.mxu0
        %1361 = vmatpush.xpose.msra.mxu0 0.0
        %1362 = vmatpush.xpose.msra.mxu0 0.0
        %1363 = vmatpush.xpose.msra.mxu0 0.0
        %1364 = vmatpush.xpose.msra.mxu0 0.0
        %1365 = vmatpush.xpose.msra.mxu0 0.0
        %1366 = vmatpush.xpose.msra.mxu0 0.0
        %1367 = vmatpush.xpose.msra.mxu0 0.0
        %1368 = vmatpush.xpose.msra.mxu0 0.0
        %1369 = vmatpush.xpose.msra.mxu0 0.0
        %1370 = vmatpush.xpose.msra.mxu0 0.0
        %1371 = vmatpush.xpose.msra.mxu0 0.0
        %1372 = vmatpush.xpose.msra.mxu0 0.0
        %1373 = vmatpush.xpose.msra.mxu0 %v1336
        %1374 = vmatpush.xpose.msra.mxu0 %v1334
        %1375 = vmatpush.xpose.msra.mxu0 %v1332
        %1376 = vmatpush.xpose.msra.mxu0 %v1330
        %1377 = vmatmul.f32.gmra.mxu0 %v1338
        %v1378 = vpop.f32.mrf.mxu0
        %v1379 = vadd.f32 %v1359, %v1378
        %1380 = vdwg.mxu0
        %v1381 = vadd.f32 %v1327, %v1379
        %s1382 = scalar_lea.vmem %s3, 960
        %v1383 = vld [vmem:[%s1382] sm:$0xff]
        %v1384 = vld [vmem:[%s1382 + $0x8] sm:$0xff]
        %v1385 = vld [vmem:[%s1382 + $0x10] sm:$0xff]
        %v1386 = vld [vmem:[%s1382 + $0x18] sm:$0xff]
        %v1387 = vld [vmem:[%s1382 + $0x20] sm:$0xff]
        %v1388 = vld [vmem:[%s1382 + $0x28] sm:$0xff]
        %v1389 = vld [vmem:[%s1382 + $0x30] sm:$0xff]
        %v1390 = vld [vmem:[%s1382 + $0x38] sm:$0xff]
        %v1391 = vrot.slane %v574, 7
        %v1392 = vrot.slane %v575, 7
        %1395 = vmatpush.xpose.msra.mxu0 0.0
        %1396 = vmatpush.xpose.msra.mxu0 0.0
        %1397 = vmatpush.xpose.msra.mxu0 0.0
        %1398 = vmatpush.xpose.msra.mxu0 0.0
        %1399 = vmatpush.xpose.msra.mxu0 0.0
        %1400 = vmatpush.xpose.msra.mxu0 0.0
        %1401 = vmatpush.xpose.msra.mxu0 0.0
        %1402 = vmatpush.xpose.msra.mxu0 0.0
        %1403 = vmatpush.xpose.msra.mxu0 0.0
        %1404 = vmatpush.xpose.msra.mxu0 0.0
        %1405 = vmatpush.xpose.msra.mxu0 0.0
        %1406 = vmatpush.xpose.msra.mxu0 0.0
        %1407 = vmatpush.xpose.msra.mxu0 %v1389
        %1408 = vmatpush.xpose.msra.mxu0 %v1387
        %1409 = vmatpush.xpose.msra.mxu0 %v1385
        %1410 = vmatpush.xpose.msra.mxu0 %v1383
        %1411 = vmatmul.f32.gmra.mxu0 %v1391
        %v1412 = vpop.f32.mrf.mxu0
        %v1413 = vadd.f32 0.0, %v1412
        %1414 = vdwg.mxu0
        %1415 = vmatpush.xpose.msra.mxu0 0.0
        %1416 = vmatpush.xpose.msra.mxu0 0.0
        %1417 = vmatpush.xpose.msra.mxu0 0.0
        %1418 = vmatpush.xpose.msra.mxu0 0.0
        %1419 = vmatpush.xpose.msra.mxu0 0.0
        %1420 = vmatpush.xpose.msra.mxu0 0.0
        %1421 = vmatpush.xpose.msra.mxu0 0.0
        %1422 = vmatpush.xpose.msra.mxu0 0.0
        %1423 = vmatpush.xpose.msra.mxu0 0.0
        %1424 = vmatpush.xpose.msra.mxu0 0.0
        %1425 = vmatpush.xpose.msra.mxu0 0.0
        %1426 = vmatpush.xpose.msra.mxu0 0.0
        %1427 = vmatpush.xpose.msra.mxu0 %v1390
        %1428 = vmatpush.xpose.msra.mxu0 %v1388
        %1429 = vmatpush.xpose.msra.mxu0 %v1386
        %1430 = vmatpush.xpose.msra.mxu0 %v1384
        %1431 = vmatmul.f32.gmra.mxu0 %v1392
        %v1432 = vpop.f32.mrf.mxu0
        %v1433 = vadd.f32 %v1413, %v1432
        %1434 = vdwg.mxu0
        %v1435 = vadd.f32 %v1381, %v1433
        %v1436 = vmax.f32 %v1435, 0.0
        %v1437 = vld [vmem:[%s5] sm:$0xff]
        %v1438 = vld [vmem:[%s5 + $0x8] sm:$0xff]
        %v1439 = vld [vmem:[%s5 + $0x10] sm:$0xff]
        %v1440 = vld [vmem:[%s5 + $0x18] sm:$0xff]
        %v1441 = vld [vmem:[%s6] sm:$0x1]
        %vm1442 = vcmask 261120
        %v1444 = vsel %vm1442, %v1436, 0
        %1446 = vmatpush.msra.mxu0 0.0
        %1447 = vmatpush.msra.mxu0 0.0
        %1448 = vmatpush.msra.mxu0 0.0
        %1449 = vmatpush.msra.mxu0 0.0
        %1450 = vmatpush.msra.mxu0 0.0
        %1451 = vmatpush.msra.mxu0 0.0
        %1452 = vmatpush.msra.mxu0 0.0
        %1453 = vmatpush.msra.mxu0 0.0
        %1454 = vmatpush.msra.mxu0 0.0
        %1455 = vmatpush.msra.mxu0 0.0
        %1456 = vmatpush.msra.mxu0 0.0
        %1457 = vmatpush.msra.mxu0 0.0
        %1458 = vmatpush.msra.mxu0 %v1440
        %1459 = vmatpush.msra.mxu0 %v1439
        %1460 = vmatpush.msra.mxu0 %v1438
        %1461 = vmatpush.msra.mxu0 %v1437
        %1462 = vmatmul.f32.gmra.mxu0 %v1444
        %v1463 = vpop.f32.mrf.mxu0
        %v1464 = vadd.f32 %v1441, %v1463
        %1465 = vdwg.mxu0
        %vm1466 = vcmask 8192
        %1467 = vst.msk [vmem:[%s270] sm:$0x1] %vm1466, %v1464
        %s1468 = sand.u32 %s181, 1
        %s1469 = scalar_lea.sflag [#allocation3], %s1468
        %s1470 = sand.u32 %s181, 1
        %s1471 = scalar_lea.vmem [#allocation2], %s1470
        // Predicated region
        $region49: #{light_cnn_forward.3} parent=47 // pred_check
          %p1472 = pneg %p191
        $region50: #{light_cnn_forward.3} parent=47 // pred_check_branch
          %1474 = sbr.rel (%p1472) target = $region52
        $region51: #{light_cnn_forward.3} parent=47 // pred_region
          %1476 = vsyncadd %s1469, 0
          %s1477 = scalar_lea.hbm %s7, %s21
          %s1479 = sshll.u32 %s1471, 4
          %s1480 = int_to_ptr.vmem [resolvable:$true] %s1479
          %s1481 = sshll.u32 %s1477, 4
          %s1482 = int_to_ptr.hbm [resolvable:$true] %s1481
          %1484 = dma.vmem_to_hbm [thread:$0]  %s1480, 16, %s1482, %s1469
        $region52: #{light_cnn_forward.3} parent=47 // pred_fallthru
          _
      $region48: #{light_cnn_forward.3} parent=5 // pred_fallthru
        _
      %p1485 = scmp.le.s32.totalorder 2, %s16
      // Predicated region
      $region53: #{light_cnn_forward.3} parent=5 // pred_check
        %p1486 = pneg %p1485
      $region54: #{light_cnn_forward.3} parent=5 // pred_check_branch
        %1488 = sbr.rel (%p1486) target = $region56
      $region55: #{light_cnn_forward.3} parent=5 // pred_region
        %s1489 = ssub.s32 %s16, 2
        // Predicated region
        $region57: #{light_cnn_forward.3} parent=55 // pred_check
          %p1490 = pneg %p197
        $region58: #{light_cnn_forward.3} parent=55 // pred_check_branch
          %1492 = sbr.rel (%p1490) target = $region60
        $region59: #{light_cnn_forward.3} parent=55 // pred_region
          %s1493 = sand.u32 %s182, 1
          %s1494 = scalar_lea.sflag [#allocation3], %s1493
          %s1495 = sand.u32 %s182, 1
          %s1496 = scalar_lea.vmem [#allocation2], %s1495
          %1498 = dma.done %s1494, 16
        $region60: #{light_cnn_forward.3} parent=55 // pred_fallthru
          _
      $region56: #{light_cnn_forward.3} parent=5 // pred_fallthru
        _
    $region6: #{light_cnn_forward.3} parent=1 // loop_footer
      %s20 = sadd.s32 1, %s16
    $region7: #{light_cnn_forward.3} parent=1 // loop_footer_branch
      %15 = sbr.rel target = $region3
    $region8: #{light_cnn_forward.3} parent=1 // loop_exit
      _
    %1499 = vsyncpa [#allocation3], 1
    %s1500 = scalar_lea.sflag [#allocation3], 1
    %1501 = vsyncpa %s1500, 1

</llo_original>
